<compile_context>
chip_gen: v5e
topology: v5e:2x2
jax: 0.10.0
libtpu: 0.0.40
codegen_flags: <defaults>
</compile_context>

<pallas_src>
import functools

import jax
import jax.numpy as jnp
from jax import lax
from jax.experimental import pallas as pl
from jax.experimental.pallas import tpu as pltpu


def _round_up(v, m):
    return (v + m - 1) // m * m


@functools.lru_cache(maxsize=None)
def probe_roll_convention():
    """+1 if pltpu.roll matches jnp.roll (out[i] = in[i - shift]), -1 if it
    rotates the opposite way, 0 if unavailable (kernel then falls back to a
    slice-based shift that always lowers).  Memoized: compiled once, on the
    same default backend that executes the main kernel."""
    try:
        def k(x_ref, o_ref):
            o_ref[...] = pltpu.roll(x_ref[...], 1, axis=1)

        x = jnp.broadcast_to(jnp.arange(128, dtype=jnp.float32), (8, 128))
        out = jax.device_get(
            pl.pallas_call(
                k, out_shape=jax.ShapeDtypeStruct((8, 128), jnp.float32)
            )(x))
        if out[0, 1] == 0.0 and out[0, 0] == 127.0:
            return 1      # jnp.roll convention
        if out[0, 0] == 1.0:
            return -1     # opposite convention
        return 0
    except Exception:
        return 0


# --------------------------------------------------------------------------
# Kernel
# --------------------------------------------------------------------------
def inception_kernel(x_ref, col_ref, w_pw_ref, b_pw_ref, w_tap_ref,
                     b2_ref, b3_ref, o_ref, *, L, roll_sign):
    """One grid step = Bt batch samples flattened on the lane axis.

    x_ref   : (Cp, Nt)       Nt = Bt * Lp; channel- and length-padded input
    col_ref : (1, Nt) int32  within-sample column index (0 .. Lp-1)
    w_pw    : (128, 2*Cp)    block-diag [[w1;w2a;w3a], 0], [0, w4]
    b_pw    : (128, 1)       [b1; b2a; b3a; b4]
    w_tap   : (256, 64)      M-stacked taps: rows 0:96 branch2 (3 taps),
                             rows 96:256 branch3 (5 taps); cols 0:32 act on
                             y2, cols 32:64 act on y3
    o_ref   : (128, Nt)      concat([b1, b2, b3, b4]) along channels
    """
    f32 = jnp.float32
    x = x_ref[...]                       # (Cp, Nt)
    col = col_ref[...]                   # (1, Nt) int32
    N = x.shape[-1]

    def gshift(a, delta):
        # out[:, g] = a[:, g + delta]; wrapped / out-of-sample source columns
        # are garbage and MUST be masked by the caller.
        if roll_sign != 0:
            return pltpu.roll(a, (-roll_sign * delta) % N, axis=1)
        rows = a.shape[0]
        pad = jnp.zeros((rows, abs(delta)), a.dtype)
        if delta > 0:
            return jnp.concatenate([a[:, delta:], pad], axis=1)
        return jnp.concatenate([pad, a[:, :delta]], axis=1)

    # Per-sample source-validity masks: source column (col + delta) must lie in
    # the sample's real range [0, L).  This simultaneously implements the
    # conv / maxpool boundary padding AND blocks cross-sample leakage of the
    # flattened-lane roll (padded tail columns never feed real outputs).
    masks = {}
    for d in (-2, -1, 1, 2):
        s = col + d
        masks[d] = (s >= 0) & (s < L)

    def shift(a, delta, fill=0.0):
        return jnp.where(masks[delta], gshift(a, delta), fill)

    # ---- branch4 input: MaxPool1d(k=3, s=1, pad=1); missing taps -> -inf ----
    neg_inf = float("-inf")
    xm = jnp.maximum(jnp.maximum(shift(x, -1, neg_inf), x),
                     shift(x, 1, neg_inf))

    # ---- Stage 1: all four 1x1 convolutions as ONE block-diagonal matmul ----
    xcat = jnp.concatenate([x, xm], axis=0)                     # (2*Cp, Nt)
    p = jnp.dot(w_pw_ref[...], xcat,
                preferred_element_type=f32) + b_pw_ref[...]     # (128, Nt)
    # rows 0:32 = branch1 (pre-ReLU), 32:64 = y2, 64:96 = y3, 96:128 = branch4.

    # ---- Stage 2: branch2 (3-tap) + branch3 (5-tap) convs as ONE matmul -----
    # Tap index is stacked on M; shift the 32-row tap products afterwards
    # (W_t @ shift(y, d, 0) == shift(W_t @ y, d, 0)), so no stacked-K temps.
    z = jnp.dot(w_tap_ref[...], p[32:96, :],
                preferred_element_type=f32)                     # (256, Nt)
    br2 = shift(z[0:32], -1) + z[32:64] + shift(z[64:96], 1) + b2_ref[...]
    br3 = (shift(z[96:128], -2) + shift(z[128:160], -1) + z[160:192]
           + shift(z[192:224], 1) + shift(z[224:256], 2) + b3_ref[...])

    # ---- ReLU + store each branch straight into its 32-row output slab ------
    o_ref[0:32, :] = jnp.maximum(p[0:32, :], 0.0)
    o_ref[32:64, :] = jnp.maximum(br2, 0.0)
    o_ref[64:96, :] = jnp.maximum(br3, 0.0)
    o_ref[96:128, :] = jnp.maximum(p[96:128, :], 0.0)


# --------------------------------------------------------------------------
# Wrapper
# --------------------------------------------------------------------------
def _pick_bt(B, Lp, target_cols):
    """Largest divisor of B with Bt * Lp <= target_cols (at least 1)."""
    cap = max(1, target_cols // Lp)
    best = 1
    for d in range(1, B + 1):
        if B % d == 0 and d <= cap:
            best = d
    return best


def inception1d_pallas(x, params, *, roll_sign=None, target_cols=4096):
    """x: (B, C_in, L) float32.  params: dict of weights (see init_params)."""
    B, C_in, L = x.shape
    if roll_sign is None:
        roll_sign = probe_roll_convention()

    Cp = _round_up(C_in, 8)        # sublane-aligned channel count
    Lp = _round_up(L, 128)         # lane-dense per-sample length

    # Pad channels/length with zeros, fold batch into the lane axis.
    xp = jnp.pad(x, ((0, 0), (0, Cp - C_in), (0, Lp - L)))
    x_flat = xp.transpose(1, 0, 2).reshape(Cp, B * Lp)          # (Cp, B*Lp)
    col_ids = jnp.tile(jnp.arange(Lp, dtype=jnp.int32), B)[None, :]

    # ---- one-time weight fusion (plain XLA, outside the kernel) -------------
    w96 = jnp.concatenate([params["w1"], params["w2a"], params["w3a"]], axis=0)
    w_pw = jnp.zeros((128, 2 * Cp), jnp.float32)
    w_pw = w_pw.at[0:96, 0:C_in].set(w96)                       # acts on x
    w_pw = w_pw.at[96:128, Cp:Cp + C_in].set(params["w4"])      # acts on pooled x
    b_pw = jnp.concatenate(
        [params["b1"], params["b2a"], params["b3a"], params["b4"]], axis=0)

    w_tap = jnp.zeros((256, 64), jnp.float32)
    for t in range(3):
        w_tap = w_tap.at[32 * t:32 * (t + 1), 0:32].set(params["w2b"][t])
    for t in range(5):
        w_tap = w_tap.at[96 + 32 * t:96 + 32 * (t + 1), 32:64].set(params["w3b"][t])
    b2b, b3b = params["b2b"], params["b3b"]

    # ---- grid sizing ---------------------------------------------------------
    Bt = _pick_bt(B, Lp, target_cols)
    Nt = Bt * Lp
    grid = (B // Bt,)
    # TODO(synk): when Lp alone exceeds target_cols, add an L-tiling grid axis
    # with a +-2 column halo instead of taking the whole sample per step.

    flops = 2 * B * Lp * (128 * (2 * Cp) + 256 * 64)
    bytes_accessed = 4 * (x_flat.size + col_ids.size + 128 * B * Lp
                          + w_pw.size + b_pw.size + w_tap.size + 64)
    cost = pl.CostEstimate(flops=flops, transcendentals=0,
                           bytes_accessed=int(bytes_accessed))

    kernel = functools.partial(inception_kernel, L=L, roll_sign=roll_sign)

    out_flat = pl.pallas_call(
        kernel,
        out_shape=jax.ShapeDtypeStruct((128, B * Lp), jnp.float32),
        grid_spec=pltpu.PrefetchScalarGridSpec(
            num_scalar_prefetch=0,
            grid=grid,
            in_specs=[
                pl.BlockSpec((Cp, Nt), lambda i: (0, i)),        # x_flat
                pl.BlockSpec((1, Nt), lambda i: (0, i)),         # col_ids
                pl.BlockSpec((128, 2 * Cp), lambda i: (0, 0)),   # w_pw
                pl.BlockSpec((128, 1), lambda i: (0, 0)),        # b_pw
                pl.BlockSpec((256, 64), lambda i: (0, 0)),       # w_tap
                pl.BlockSpec((32, 1), lambda i: (0, 0)),         # b2b
                pl.BlockSpec((32, 1), lambda i: (0, 0)),         # b3b
            ],
            out_specs=pl.BlockSpec((128, Nt), lambda i: (0, i)),
        ),
        compiler_params=pltpu.CompilerParams(
            dimension_semantics=("parallel",),
            vmem_limit_bytes=32 * 1024 * 1024,
        ),
        cost_estimate=cost,
    )(x_flat, col_ids, w_pw, b_pw, w_tap, b2b, b3b)

    # Un-flatten batch and drop length padding.
    return out_flat.reshape(128, B, Lp).transpose(1, 0, 2)[:, :, :L]


# --------------------------------------------------------------------------
# Parameters + pure-JAX reference (matches PyTorch semantics)
# --------------------------------------------------------------------------
def init_params(key, in_channels):
    """Synthetic parameters matching Inception1D.__init__ shapes.
    Tap convs stored with tap axis leading: (k, out, in)."""
    ks = jax.random.split(key, 12)

    def w(k, shape, scale=0.1):
        return (scale * jax.random.normal(k, shape)).astype(jnp.float32)

    return {
        "w1":  w(ks[0], (32, in_channels)),
        "b1":  w(ks[1], (32, 1)),
        "w2a": w(ks[2], (32, in_channels)),
        "b2a": w(ks[3], (32, 1)),
        "w2b": w(ks[4], (3, 32, 32)),
        "b2b": w(ks[5], (32, 1)),
        "w3a": w(ks[6], (32, in_channels)),
        "b3a": w(ks[7], (32, 1)),
        "w3b": w(ks[8], (5, 32, 32)),
        "b3b": w(ks[9], (32, 1)),
        "w4":  w(ks[10], (32, in_channels)),
        "b4":  w(ks[11], (32, 1)),
    }


def inception1d_reference(x, p):
    """Plain-JAX reference via lax conv / reduce_window (matches PyTorch)."""
    dn = ("NCH", "OIH", "NCH")

    def conv(inp, w_oik, b, pad):
        out = lax.conv_general_dilated(inp, w_oik, window_strides=(1,),
                                       padding=[(pad, pad)],
                                       dimension_numbers=dn)
        return out + b[None, :, :]

    w1 = p["w1"][:, :, None]
    w2a = p["w2a"][:, :, None]
    w2b = jnp.transpose(p["w2b"], (1, 2, 0))
    w3a = p["w3a"][:, :, None]
    w3b = jnp.transpose(p["w3b"], (1, 2, 0))
    w4 = p["w4"][:, :, None]

    b1 = jax.nn.relu(conv(x, w1, p["b1"], 0))
    b2 = jax.nn.relu(conv(conv(x, w2a, p["b2a"], 0), w2b, p["b2b"], 1))
    b3 = jax.nn.relu(conv(conv(x, w3a, p["b3a"], 0), w3b, p["b3b"], 2))
    pooled = lax.reduce_window(x, -jnp.inf, lax.max,
                               window_dimensions=(1, 1, 3),
                               window_strides=(1, 1, 1),
                               padding=[(0, 0), (0, 0), (1, 1)])
    b4 = jax.nn.relu(conv(pooled, w4, p["b4"], 0))
    return jnp.concatenate([b1, b2, b3, b4], axis=1)


if __name__ == "__main__":
    # Small demo shapes; L is deliberately NOT a multiple of 128 to exercise
    # the length-padding / per-sample mask path.
    B, C_IN, L = 4, 4, 96
    key = jax.random.PRNGKey(0)
    kx, kp = jax.random.split(key)
    x = jax.random.normal(kx, (B, C_IN, L), dtype=jnp.float32)
    params = init_params(kp, C_IN)

    out = jax.block_until_ready(inception1d_pallas(x, params))
    ref = jax.block_until_ready(inception1d_reference(x, params))

    assert out.shape == (B, 128, L), out.shape
    err = float(jnp.max(jnp.abs(out - ref)))
    assert err < 1e-3, f"max abs error {err}"

    print("KERNEL_OK")
</pallas_src>

<mosaic_0001>
module attributes {stable_mosaic.version = 11 : i64} {
  func.func @k(%arg0: memref<8x128xf32, #tpu.memory_space<vmem>>, %arg1: memref<8x128xf32, #tpu.memory_space<vmem>>) attributes {dimension_semantics = [], scalar_prefetch = 0 : i64, scratch_operands = 0 : i64, tpu.core_type = #tpu.core_type<tc>} {
    %c0 = arith.constant 0 : index
    %c0_0 = arith.constant 0 : index
    %0 = vector.load %arg0[%c0, %c0_0] : memref<8x128xf32, #tpu.memory_space<vmem>>, vector<8x128xf32>
    %c1_i32 = arith.constant 1 : i32
    %1 = tpu.dynamic_rotate %0 by %c1_i32 dim 1 : vector<8x128xf32>, i32 -> vector<8x128xf32>
    %c0_1 = arith.constant 0 : index
    %c0_2 = arith.constant 0 : index
    %2 = vector.load %arg1[%c0_1, %c0_2] : memref<8x128xf32, #tpu.memory_space<vmem>>, vector<8x128xf32>
    tpu.vector_store %arg1[%c0_1, %c0_2], %1 {strides = array<i32>} : memref<8x128xf32, #tpu.memory_space<vmem>>, vector<8x128xf32>,
    return
  }
}

module attributes {stable_mosaic.version = 11 : i64} {
  func.func @inception_kernel(%arg0: i32, %arg1: memref<8x512xf32, #tpu.memory_space<vmem>>, %arg2: memref<1x512xi32, #tpu.memory_space<vmem>>, %arg3: memref<128x16xf32, #tpu.memory_space<vmem>>, %arg4: memref<128x1xf32, #tpu.memory_space<vmem>>, %arg5: memref<256x64xf32, #tpu.memory_space<vmem>>, %arg6: memref<32x1xf32, #tpu.memory_space<vmem>>, %arg7: memref<32x1xf32, #tpu.memory_space<vmem>>, %arg8: memref<128x512xf32, #tpu.memory_space<vmem>>) attributes {dimension_semantics = [#tpu.dimension_semantics<parallel>], iteration_bounds = array<i64: 1>, scalar_prefetch = 0 : i64, scratch_operands = 0 : i64, tpu.core_type = #tpu.core_type<tc>, window_params = [{transform_indices = @transform_0, window_bounds = array<i64: 8, 512>}, {transform_indices = @transform_1, window_bounds = array<i64: 1, 512>}, {pipeline_mode = #tpu.pipeline_mode<synchronous>, transform_indices = @transform_2, window_bounds = array<i64: 128, 16>}, {pipeline_mode = #tpu.pipeline_mode<synchronous>, transform_indices = @transform_3, window_bounds = array<i64: 128, 1>}, {pipeline_mode = #tpu.pipeline_mode<synchronous>, transform_indices = @transform_4, window_bounds = array<i64: 256, 64>}, {pipeline_mode = #tpu.pipeline_mode<synchronous>, transform_indices = @transform_5, window_bounds = array<i64: 32, 1>}, {pipeline_mode = #tpu.pipeline_mode<synchronous>, transform_indices = @transform_6, window_bounds = array<i64: 32, 1>}, {transform_indices = @transform_7, window_bounds = array<i64: 128, 512>}]} {
    %c0 = arith.constant 0 : index
    %c0_0 = arith.constant 0 : index
    %0 = vector.load %arg1[%c0, %c0_0] : memref<8x512xf32, #tpu.memory_space<vmem>>, vector<8x512xf32>
    %c0_1 = arith.constant 0 : index
    %c0_2 = arith.constant 0 : index
    %1 = vector.load %arg2[%c0_1, %c0_2] : memref<1x512xi32, #tpu.memory_space<vmem>>, vector<1x512xi32>
    %c-2_i32 = arith.constant -2 : i32
    %2 = vector.broadcast %c-2_i32 : i32 to vector<1x512xi32>
    %3 = arith.addi %1, %2 : vector<1x512xi32>
    %c0_i32 = arith.constant 0 : i32
    %4 = vector.broadcast %c0_i32 : i32 to vector<1x512xi32>
    %5 = arith.cmpi sge, %3, %4 : vector<1x512xi32>
    %c96_i32 = arith.constant 96 : i32
    %6 = vector.broadcast %c96_i32 : i32 to vector<1x512xi32>
    %7 = arith.cmpi slt, %3, %6 : vector<1x512xi32>
    %8 = arith.andi %5, %7 : vector<1x512xi1>
    %c-1_i32 = arith.constant -1 : i32
    %9 = vector.broadcast %c-1_i32 : i32 to vector<1x512xi32>
    %10 = arith.addi %1, %9 : vector<1x512xi32>
    %c0_i32_3 = arith.constant 0 : i32
    %11 = vector.broadcast %c0_i32_3 : i32 to vector<1x512xi32>
    %12 = arith.cmpi sge, %10, %11 : vector<1x512xi32>
    %c96_i32_4 = arith.constant 96 : i32
    %13 = vector.broadcast %c96_i32_4 : i32 to vector<1x512xi32>
    %14 = arith.cmpi slt, %10, %13 : vector<1x512xi32>
    %15 = arith.andi %12, %14 : vector<1x512xi1>
    %c1_i32 = arith.constant 1 : i32
    %16 = vector.broadcast %c1_i32 : i32 to vector<1x512xi32>
    %17 = arith.addi %1, %16 : vector<1x512xi32>
    %c0_i32_5 = arith.constant 0 : i32
    %18 = vector.broadcast %c0_i32_5 : i32 to vector<1x512xi32>
    %19 = arith.cmpi sge, %17, %18 : vector<1x512xi32>
    %c96_i32_6 = arith.constant 96 : i32
    %20 = vector.broadcast %c96_i32_6 : i32 to vector<1x512xi32>
    %21 = arith.cmpi slt, %17, %20 : vector<1x512xi32>
    %22 = arith.andi %19, %21 : vector<1x512xi1>
    %c2_i32 = arith.constant 2 : i32
    %23 = vector.broadcast %c2_i32 : i32 to vector<1x512xi32>
    %24 = arith.addi %1, %23 : vector<1x512xi32>
    %c0_i32_7 = arith.constant 0 : i32
    %25 = vector.broadcast %c0_i32_7 : i32 to vector<1x512xi32>
    %26 = arith.cmpi sge, %24, %25 : vector<1x512xi32>
    %c96_i32_8 = arith.constant 96 : i32
    %27 = vector.broadcast %c96_i32_8 : i32 to vector<1x512xi32>
    %28 = arith.cmpi slt, %24, %27 : vector<1x512xi32>
    %29 = arith.andi %26, %28 : vector<1x512xi1>
    %cst = arith.constant 0.000000e+00 : f32
    %30 = vector.broadcast %cst : f32 to vector<8x1xf32>
    %31 = vector.extract_strided_slice %0 {offsets = [0, 0], sizes = [8, 511], strides = [1, 1]} : vector<8x512xf32> to vector<8x511xf32>
    %32 = tpu.concatenate %30, %31 in 1 : vector<8x1xf32>, vector<8x511xf32> -> vector<8x512xf32>
    %cst_9 = arith.constant 0xFF800000 : f32
    %33 = vector.shape_cast %15 : vector<1x512xi1> to vector<1x512xi1>
    %34 = vector.broadcast %33 : vector<1x512xi1> to vector<8x512xi1>
    %35 = vector.broadcast %cst_9 : f32 to vector<8x512xf32>
    %36 = arith.select %34, %32, %35 : vector<8x512xi1>, vector<8x512xf32>
    %37 = arith.maximumf %36, %0 : vector<8x512xf32>
    %cst_10 = arith.constant 0.000000e+00 : f32
    %38 = vector.broadcast %cst_10 : f32 to vector<8x1xf32>
    %39 = vector.extract_strided_slice %0 {offsets = [0, 1], sizes = [8, 511], strides = [1, 1]} : vector<8x512xf32> to vector<8x511xf32>
    %40 = tpu.concatenate %39, %38 in 1 : vector<8x511xf32>, vector<8x1xf32> -> vector<8x512xf32>
    %cst_11 = arith.constant 0xFF800000 : f32
    %41 = vector.shape_cast %22 : vector<1x512xi1> to vector<1x512xi1>
    %42 = vector.broadcast %41 : vector<1x512xi1> to vector<8x512xi1>
    %43 = vector.broadcast %cst_11 : f32 to vector<8x512xf32>
    %44 = arith.select %42, %40, %43 : vector<8x512xi1>, vector<8x512xf32>
    %45 = arith.maximumf %37, %44 : vector<8x512xf32>
    %46 = tpu.concatenate %0, %45 in 0 : vector<8x512xf32>, vector<8x512xf32> -> vector<16x512xf32>
    %c0_12 = arith.constant 0 : index
    %c0_13 = arith.constant 0 : index
    %47 = vector.load %arg3[%c0_12, %c0_13] : memref<128x16xf32, #tpu.memory_space<vmem>>, vector<128x16xf32>
    %cst_14 = arith.constant dense<0.000000e+00> : vector<128x512xf32>
    %48 = tpu.matmul %47, %46, %cst_14 {dimension_numbers = #tpu.dot_dimension_numbers<[1], [0], [0], [1], [0, 0, 1, 1], [], []>} : vector<128x16xf32>, vector<16x512xf32>, vector<128x512xf32> -> vector<128x512xf32>
    %c0_15 = arith.constant 0 : index
    %c0_16 = arith.constant 0 : index
    %49 = vector.load %arg4[%c0_15, %c0_16] : memref<128x1xf32, #tpu.memory_space<vmem>>, vector<128x1xf32>
    %50 = vector.broadcast %49 : vector<128x1xf32> to vector<128x512xf32>
    %51 = arith.addf %48, %50 : vector<128x512xf32>
    %c0_17 = arith.constant 0 : index
    %c0_18 = arith.constant 0 : index
    %52 = vector.load %arg5[%c0_17, %c0_18] : memref<256x64xf32, #tpu.memory_space<vmem>>, vector<256x64xf32>
    %53 = vector.extract_strided_slice %51 {offsets = [32, 0], sizes = [64, 512], strides = [1, 1]} : vector<128x512xf32> to vector<64x512xf32>
    %cst_19 = arith.constant dense<0.000000e+00> : vector<256x512xf32>
    %54 = tpu.matmul %52, %53, %cst_19 {dimension_numbers = #tpu.dot_dimension_numbers<[1], [0], [0], [1], [0, 0, 1, 1], [], []>} : vector<256x64xf32>, vector<64x512xf32>, vector<256x512xf32> -> vector<256x512xf32>
    %55 = vector.extract_strided_slice %54 {offsets = [0, 0], sizes = [32, 512], strides = [1, 1]} : vector<256x512xf32> to vector<32x512xf32>
    %cst_20 = arith.constant 0.000000e+00 : f32
    %56 = vector.broadcast %cst_20 : f32 to vector<32x1xf32>
    %57 = vector.extract_strided_slice %55 {offsets = [0, 0], sizes = [32, 511], strides = [1, 1]} : vector<32x512xf32> to vector<32x511xf32>
    %58 = tpu.concatenate %56, %57 in 1 : vector<32x1xf32>, vector<32x511xf32> -> vector<32x512xf32>
    %cst_21 = arith.constant 0.000000e+00 : f32
    %59 = vector.shape_cast %15 : vector<1x512xi1> to vector<1x512xi1>
    %60 = vector.broadcast %59 : vector<1x512xi1> to vector<32x512xi1>
    %61 = vector.broadcast %cst_21 : f32 to vector<32x512xf32>
    %62 = arith.select %60, %58, %61 : vector<32x512xi1>, vector<32x512xf32>
    %63 = vector.extract_strided_slice %54 {offsets = [32, 0], sizes = [32, 512], strides = [1, 1]} : vector<256x512xf32> to vector<32x512xf32>
    %64 = arith.addf %62, %63 : vector<32x512xf32>
    %65 = vector.extract_strided_slice %54 {offsets = [64, 0], sizes = [32, 512], strides = [1, 1]} : vector<256x512xf32> to vector<32x512xf32>
    %cst_22 = arith.constant 0.000000e+00 : f32
    %66 = vector.broadcast %cst_22 : f32 to vector<32x1xf32>
    %67 = vector.extract_strided_slice %65 {offsets = [0, 1], sizes = [32, 511], strides = [1, 1]} : vector<32x512xf32> to vector<32x511xf32>
    %68 = tpu.concatenate %67, %66 in 1 : vector<32x511xf32>, vector<32x1xf32> -> vector<32x512xf32>
    %cst_23 = arith.constant 0.000000e+00 : f32
    %69 = vector.shape_cast %22 : vector<1x512xi1> to vector<1x512xi1>
    %70 = vector.broadcast %69 : vector<1x512xi1> to vector<32x512xi1>
    %71 = vector.broadcast %cst_23 : f32 to vector<32x512xf32>
    %72 = arith.select %70, %68, %71 : vector<32x512xi1>, vector<32x512xf32>
    %73 = arith.addf %64, %72 : vector<32x512xf32>
    %c0_24 = arith.constant 0 : index
    %c0_25 = arith.constant 0 : index
    %74 = vector.load %arg6[%c0_24, %c0_25] : memref<32x1xf32, #tpu.memory_space<vmem>>, vector<32x1xf32>
    %75 = vector.broadcast %74 : vector<32x1xf32> to vector<32x512xf32>
    %76 = arith.addf %73, %75 : vector<32x512xf32>
    %77 = vector.extract_strided_slice %54 {offsets = [96, 0], sizes = [32, 512], strides = [1, 1]} : vector<256x512xf32> to vector<32x512xf32>
    %cst_26 = arith.constant 0.000000e+00 : f32
    %78 = vector.broadcast %cst_26 : f32 to vector<32x2xf32>
    %79 = vector.extract_strided_slice %77 {offsets = [0, 0], sizes = [32, 510], strides = [1, 1]} : vector<32x512xf32> to vector<32x510xf32>
    %80 = tpu.concatenate %78, %79 in 1 : vector<32x2xf32>, vector<32x510xf32> -> vector<32x512xf32>
    %cst_27 = arith.constant 0.000000e+00 : f32
    %81 = vector.shape_cast %8 : vector<1x512xi1> to vector<1x512xi1>
    %82 = vector.broadcast %81 : vector<1x512xi1> to vector<32x512xi1>
    %83 = vector.broadcast %cst_27 : f32 to vector<32x512xf32>
    %84 = arith.select %82, %80, %83 : vector<32x512xi1>, vector<32x512xf32>
    %85 = vector.extract_strided_slice %54 {offsets = [128, 0], sizes = [32, 512], strides = [1, 1]} : vector<256x512xf32> to vector<32x512xf32>
    %cst_28 = arith.constant 0.000000e+00 : f32
    %86 = vector.broadcast %cst_28 : f32 to vector<32x1xf32>
    %87 = vector.extract_strided_slice %85 {offsets = [0, 0], sizes = [32, 511], strides = [1, 1]} : vector<32x512xf32> to vector<32x511xf32>
    %88 = tpu.concatenate %86, %87 in 1 : vector<32x1xf32>, vector<32x511xf32> -> vector<32x512xf32>
    %cst_29 = arith.constant 0.000000e+00 : f32
    %89 = vector.shape_cast %15 : vector<1x512xi1> to vector<1x512xi1>
    %90 = vector.broadcast %89 : vector<1x512xi1> to vector<32x512xi1>
    %91 = vector.broadcast %cst_29 : f32 to vector<32x512xf32>
    %92 = arith.select %90, %88, %91 : vector<32x512xi1>, vector<32x512xf32>
    %93 = arith.addf %84, %92 : vector<32x512xf32>
    %94 = vector.extract_strided_slice %54 {offsets = [160, 0], sizes = [32, 512], strides = [1, 1]} : vector<256x512xf32> to vector<32x512xf32>
    %95 = arith.addf %93, %94 : vector<32x512xf32>
    %96 = vector.extract_strided_slice %54 {offsets = [192, 0], sizes = [32, 512], strides = [1, 1]} : vector<256x512xf32> to vector<32x512xf32>
    %cst_30 = arith.constant 0.000000e+00 : f32
    %97 = vector.broadcast %cst_30 : f32 to vector<32x1xf32>
    %98 = vector.extract_strided_slice %96 {offsets = [0, 1], sizes = [32, 511], strides = [1, 1]} : vector<32x512xf32> to vector<32x511xf32>
    %99 = tpu.concatenate %98, %97 in 1 : vector<32x511xf32>, vector<32x1xf32> -> vector<32x512xf32>
    %cst_31 = arith.constant 0.000000e+00 : f32
    %100 = vector.shape_cast %22 : vector<1x512xi1> to vector<1x512xi1>
    %101 = vector.broadcast %100 : vector<1x512xi1> to vector<32x512xi1>
    %102 = vector.broadcast %cst_31 : f32 to vector<32x512xf32>
    %103 = arith.select %101, %99, %102 : vector<32x512xi1>, vector<32x512xf32>
    %104 = arith.addf %95, %103 : vector<32x512xf32>
    %105 = vector.extract_strided_slice %54 {offsets = [224, 0], sizes = [32, 512], strides = [1, 1]} : vector<256x512xf32> to vector<32x512xf32>
    %cst_32 = arith.constant 0.000000e+00 : f32
    %106 = vector.broadcast %cst_32 : f32 to vector<32x2xf32>
    %107 = vector.extract_strided_slice %105 {offsets = [0, 2], sizes = [32, 510], strides = [1, 1]} : vector<32x512xf32> to vector<32x510xf32>
    %108 = tpu.concatenate %107, %106 in 1 : vector<32x510xf32>, vector<32x2xf32> -> vector<32x512xf32>
    %cst_33 = arith.constant 0.000000e+00 : f32
    %109 = vector.shape_cast %29 : vector<1x512xi1> to vector<1x512xi1>
    %110 = vector.broadcast %109 : vector<1x512xi1> to vector<32x512xi1>
    %111 = vector.broadcast %cst_33 : f32 to vector<32x512xf32>
    %112 = arith.select %110, %108, %111 : vector<32x512xi1>, vector<32x512xf32>
    %113 = arith.addf %104, %112 : vector<32x512xf32>
    %c0_34 = arith.constant 0 : index
    %c0_35 = arith.constant 0 : index
    %114 = vector.load %arg7[%c0_34, %c0_35] : memref<32x1xf32, #tpu.memory_space<vmem>>, vector<32x1xf32>
    %115 = vector.broadcast %114 : vector<32x1xf32> to vector<32x512xf32>
    %116 = arith.addf %113, %115 : vector<32x512xf32>
    %117 = vector.extract_strided_slice %51 {offsets = [0, 0], sizes = [32, 512], strides = [1, 1]} : vector<128x512xf32> to vector<32x512xf32>
    %cst_36 = arith.constant 0.000000e+00 : f32
    %118 = vector.broadcast %cst_36 : f32 to vector<32x512xf32>
    %119 = arith.maximumf %117, %118 : vector<32x512xf32>
    %c0_37 = arith.constant 0 : index
    %c0_38 = arith.constant 0 : index
    %120 = vector.load %arg8[%c0_37, %c0_38] : memref<128x512xf32, #tpu.memory_space<vmem>>, vector<32x512xf32>
    tpu.vector_store %arg8[%c0_37, %c0_38], %119 {strides = array<i32>} : memref<128x512xf32, #tpu.memory_space<vmem>>, vector<32x512xf32>,
    %cst_39 = arith.constant 0.000000e+00 : f32
    %121 = vector.broadcast %cst_39 : f32 to vector<32x512xf32>
    %122 = arith.maximumf %76, %121 : vector<32x512xf32>
    %c32 = arith.constant 32 : index
    %c0_40 = arith.constant 0 : index
    %123 = vector.load %arg8[%c32, %c0_40] : memref<128x512xf32, #tpu.memory_space<vmem>>, vector<32x512xf32>
    tpu.vector_store %arg8[%c32, %c0_40], %122 {strides = array<i32>} : memref<128x512xf32, #tpu.memory_space<vmem>>, vector<32x512xf32>,
    %cst_41 = arith.constant 0.000000e+00 : f32
    %124 = vector.broadcast %cst_41 : f32 to vector<32x512xf32>
    %125 = arith.maximumf %116, %124 : vector<32x512xf32>
    %c64 = arith.constant 64 : index
    %c0_42 = arith.constant 0 : index
    %126 = vector.load %arg8[%c64, %c0_42] : memref<128x512xf32, #tpu.memory_space<vmem>>, vector<32x512xf32>
    tpu.vector_store %arg8[%c64, %c0_42], %125 {strides = array<i32>} : memref<128x512xf32, #tpu.memory_space<vmem>>, vector<32x512xf32>,
    %127 = vector.extract_strided_slice %51 {offsets = [96, 0], sizes = [32, 512], strides = [1, 1]} : vector<128x512xf32> to vector<32x512xf32>
    %cst_43 = arith.constant 0.000000e+00 : f32
    %128 = vector.broadcast %cst_43 : f32 to vector<32x512xf32>
    %129 = arith.maximumf %127, %128 : vector<32x512xf32>
    %c96 = arith.constant 96 : index
    %c0_44 = arith.constant 0 : index
    %130 = vector.load %arg8[%c96, %c0_44] : memref<128x512xf32, #tpu.memory_space<vmem>>, vector<32x512xf32>
    tpu.vector_store %arg8[%c96, %c0_44], %129 {strides = array<i32>} : memref<128x512xf32, #tpu.memory_space<vmem>>, vector<32x512xf32>,
    return
  }
  func.func @transform_0(%arg0: i32) -> (i32, i32) {
    %c0_i32 = arith.constant 0 : i32
    %c0_i32_0 = arith.constant 0 : i32
    return %c0_i32, %arg0 : i32, i32
  }
  func.func @transform_1(%arg0: i32) -> (i32, i32) {
    %c0_i32 = arith.constant 0 : i32
    %c0_i32_0 = arith.constant 0 : i32
    return %c0_i32, %arg0 : i32, i32
  }
  func.func @transform_2(%arg0: i32) -> (i32, i32) {
    %c0_i32 = arith.constant 0 : i32
    %c0_i32_0 = arith.constant 0 : i32
    %c0_i32_1 = arith.constant 0 : i32
    return %c0_i32, %c0_i32_0 : i32, i32
  }
  func.func @transform_3(%arg0: i32) -> (i32, i32) {
    %c0_i32 = arith.constant 0 : i32
    %c0_i32_0 = arith.constant 0 : i32
    %c0_i32_1 = arith.constant 0 : i32
    return %c0_i32, %c0_i32_0 : i32, i32
  }
  func.func @transform_4(%arg0: i32) -> (i32, i32) {
    %c0_i32 = arith.constant 0 : i32
    %c0_i32_0 = arith.constant 0 : i32
    %c0_i32_1 = arith.constant 0 : i32
    return %c0_i32, %c0_i32_0 : i32, i32
  }
  func.func @transform_5(%arg0: i32) -> (i32, i32) {
    %c0_i32 = arith.constant 0 : i32
    %c0_i32_0 = arith.constant 0 : i32
    %c0_i32_1 = arith.constant 0 : i32
    return %c0_i32, %c0_i32_0 : i32, i32
  }
  func.func @transform_6(%arg0: i32) -> (i32, i32) {
    %c0_i32 = arith.constant 0 : i32
    %c0_i32_0 = arith.constant 0 : i32
    %c0_i32_1 = arith.constant 0 : i32
    return %c0_i32, %c0_i32_0 : i32, i32
  }
  func.func @transform_7(%arg0: i32) -> (i32, i32) {
    %c0_i32 = arith.constant 0 : i32
    %c0_i32_0 = arith.constant 0 : i32
    return %c0_i32, %arg0 : i32, i32
  }
}

</mosaic_0001>

<llo_original>
// kernel: tpu_custom_call.1
$region0: #{tpu_custom_call.1}
  #allocation0 [shape = 'u32[]', space=smem, size = 0x4, offset = 0x4, fixed_abs, tag = 'smem constant byte address 0x4 - core index']
  #allocation1 [shape = 'u32[72,128]{1,0:T(1,128)}', space=vmem, size = 0x9000, scoped, tag = 'internal scratch']
  %s0 = inlined_call_operand.hbm [shape: f32[8,128], index: 0, kind: input, shape index: {}]
  %s1 = inlined_call_operand.hbm [shape: f32[8,128], index: 1, kind: output, shape index: {}]
  %s2 = sld [smem:[#allocation0]]
  $region18: #{tpu_custom_call.1} parent=0
    _
  %s4 = ssub.s32 1, %s2
  %s5 = scalar_select 0, %s4, %s2
  $region1: #{tpu_custom_call.1} parent=0
    #allocation2 [shape = 'u8[4096]{0}', space=vmem, size = 0x1000, scoped, tag = 'input window, operand 0, single buffered']
    #allocation3 [shape = 's32[1]{0}', space=sflag, size = 0x4, scoped, tag = 'scoped memory for tpu_custom_call.1']
    #allocation4 [shape = 's32[1]{0}', space=sflag, size = 0x4, scoped, tag = 'scoped memory for tpu_custom_call.1']
    #allocation5 [shape = 'u8[4096]{0}', space=vmem, size = 0x1000, scoped, tag = 'output window, operand 0, single buffered']
    %6 = vsyncpa [#allocation3], 0
    %7 = vsyncpa [#allocation4], 0
    // Predicated region
    $region2: #{tpu_custom_call.1} parent=1 // pred_check
      _
    $region3: #{tpu_custom_call.1} parent=1 // pred_check_branch
      %9 = sbr.rel (0) target = $region5
    $region4: #{tpu_custom_call.1} parent=1 // pred_region
      %11 = vsyncadd [#allocation3], 0
      %s13 = sshll.u32 %s0, 4
      %s14 = int_to_ptr.hbm [resolvable:$true] %s13
      %s15 = sshll.u32 [#allocation2], 4
      %s16 = int_to_ptr.vmem [resolvable:$true] %s15
      %18 = dma.hbm_to_vmem [thread:$0]  %s14, 128, %s16, [#allocation3]
    $region5: #{tpu_custom_call.1} parent=1 // pred_fallthru
      _
    // Predicated region
    $region6: #{tpu_custom_call.1} parent=1 // pred_check
      _
    $region7: #{tpu_custom_call.1} parent=1 // pred_check_branch
      %20 = sbr.rel (0) target = $region9
    $region8: #{tpu_custom_call.1} parent=1 // pred_region
      %22 = dma.done [#allocation3], 128
    $region9: #{tpu_custom_call.1} parent=1 // pred_fallthru
      _
    %v23 = vld [vmem:[#allocation2] sm:$0xff]
    %24 = vrot.lane.b32.xlu0 %v23, 1
    %v25 = vpop.permute.xlu0 %24
    %26 = vst [vmem:[#allocation5] sm:$0xff] %v25
    // Predicated region
    $region10: #{tpu_custom_call.1} parent=1 // pred_check
      _
    $region11: #{tpu_custom_call.1} parent=1 // pred_check_branch
      %28 = sbr.rel (0) target = $region13
    $region12: #{tpu_custom_call.1} parent=1 // pred_region
      %30 = vsyncadd [#allocation4], 0
      %s32 = sshll.u32 [#allocation5], 4
      %s33 = int_to_ptr.vmem [resolvable:$true] %s32
      %s34 = sshll.u32 %s1, 4
      %s35 = int_to_ptr.hbm [resolvable:$true] %s34
      %37 = dma.vmem_to_hbm [thread:$0]  %s33, 128, %s35, [#allocation4]
    $region13: #{tpu_custom_call.1} parent=1 // pred_fallthru
      _
    // Predicated region
    $region14: #{tpu_custom_call.1} parent=1 // pred_check
      _
    $region15: #{tpu_custom_call.1} parent=1 // pred_check_branch
      %39 = sbr.rel (0) target = $region17
    $region16: #{tpu_custom_call.1} parent=1 // pred_region
      %41 = dma.done [#allocation4], 128
    $region17: #{tpu_custom_call.1} parent=1 // pred_fallthru
      _
    %42 = vsyncpa [#allocation3], 1
    %43 = vsyncpa [#allocation4], 1

// kernel: tpu_custom_call.1
$region0: #{tpu_custom_call.1}
  #allocation0 [shape = 'u32[]', space=smem, size = 0x4, offset = 0x4, fixed_abs, tag = 'smem constant byte address 0x4 - core index']
  #allocation1 [shape = 'u32[72,128]{1,0:T(1,128)}', space=vmem, size = 0x9000, scoped, tag = 'internal scratch']
  %s0 = inlined_call_operand.vmem [shape: f32[8,512], index: 0, kind: input, shape index: {}]
  %s1 = inlined_call_operand.vmem [shape: s32[1,512], index: 1, kind: input, shape index: {}]
  %s2 = inlined_call_operand.vmem [shape: f32[128,16], index: 2, kind: input, shape index: {}]
  %s3 = inlined_call_operand.vmem [shape: f32[128,1], index: 3, kind: input, shape index: {}]
  %s4 = inlined_call_operand.vmem [shape: f32[256,64], index: 4, kind: input, shape index: {}]
  %s5 = inlined_call_operand.vmem [shape: f32[32,1], index: 5, kind: input, shape index: {}]
  %s6 = inlined_call_operand.vmem [shape: f32[32,1], index: 6, kind: input, shape index: {}]
  %s7 = inlined_call_operand.hbm [shape: f32[128,512], index: 7, kind: output, shape index: {}]
  %s8 = sld [smem:[#allocation0]]
  $region38: #{tpu_custom_call.1} parent=0
    _
  %s10 = ssub.s32 1, %s8
  %s11 = scalar_select 0, %s10, %s8
  $region1: #{tpu_custom_call.1} parent=0
    #allocation2 [shape = 'u8[262144]{0}', space=vmem, size = 0x40000, scoped, tag = 'output window, operand 0, single buffered']
    #allocation3 [shape = 's32[1]{0}', space=sflag, size = 0x4, scoped, tag = 'scoped memory for tpu_custom_call.1']
    %12 = vsyncpa [#allocation3], 0
    // Predicated region
    $region2: #{tpu_custom_call.1} parent=1 // pred_check
      _
    $region3: #{tpu_custom_call.1} parent=1 // pred_check_branch
      %14 = sbr.rel (0) target = $region5
    $region4: #{tpu_custom_call.1} parent=1 // pred_region
      _
    $region5: #{tpu_custom_call.1} parent=1 // pred_fallthru
      _
    // Predicated region
    $region6: #{tpu_custom_call.1} parent=1 // pred_check
      _
    $region7: #{tpu_custom_call.1} parent=1 // pred_check_branch
      %16 = sbr.rel (0) target = $region9
    $region8: #{tpu_custom_call.1} parent=1 // pred_region
      _
    $region9: #{tpu_custom_call.1} parent=1 // pred_fallthru
      _
    // Predicated region
    $region10: #{tpu_custom_call.1} parent=1 // pred_check
      _
    $region11: #{tpu_custom_call.1} parent=1 // pred_check_branch
      %18 = sbr.rel (0) target = $region13
    $region12: #{tpu_custom_call.1} parent=1 // pred_region
      _
    $region13: #{tpu_custom_call.1} parent=1 // pred_fallthru
      _
    // Predicated region
    $region14: #{tpu_custom_call.1} parent=1 // pred_check
      _
    $region15: #{tpu_custom_call.1} parent=1 // pred_check_branch
      %20 = sbr.rel (0) target = $region17
    $region16: #{tpu_custom_call.1} parent=1 // pred_region
      _
    $region17: #{tpu_custom_call.1} parent=1 // pred_fallthru
      _
    // Predicated region
    $region18: #{tpu_custom_call.1} parent=1 // pred_check
      _
    $region19: #{tpu_custom_call.1} parent=1 // pred_check_branch
      %22 = sbr.rel (0) target = $region21
    $region20: #{tpu_custom_call.1} parent=1 // pred_region
      _
    $region21: #{tpu_custom_call.1} parent=1 // pred_fallthru
      _
    // Predicated region
    $region22: #{tpu_custom_call.1} parent=1 // pred_check
      _
    $region23: #{tpu_custom_call.1} parent=1 // pred_check_branch
      %24 = sbr.rel (0) target = $region25
    $region24: #{tpu_custom_call.1} parent=1 // pred_region
      _
    $region25: #{tpu_custom_call.1} parent=1 // pred_fallthru
      _
    // Predicated region
    $region26: #{tpu_custom_call.1} parent=1 // pred_check
      _
    $region27: #{tpu_custom_call.1} parent=1 // pred_check_branch
      %26 = sbr.rel (0) target = $region29
    $region28: #{tpu_custom_call.1} parent=1 // pred_region
      _
    $region29: #{tpu_custom_call.1} parent=1 // pred_fallthru
      _
    %v27 = vld [vmem:[%s0] sm:$0xff]
    %v28 = vld [vmem:[%s0 + $0x8] sm:$0xff]
    %v29 = vld [vmem:[%s0 + $0x10] sm:$0xff]
    %v30 = vld [vmem:[%s0 + $0x18] sm:$0xff]
    %v31 = vld [vmem:[%s1] sm:$0xf]
    %v32 = vadd.s32 %v31, 4294967294
    %vm33 = vcmp.ge.s32.totalorder %v32, 0
    %vm34 = vcmp.lt.s32.totalorder %v32, 96
    %vm35 = vmand %vm33, %vm34
    %v36 = vadd.s32 %v31, 4294967295
    %vm37 = vcmp.ge.s32.totalorder %v36, 0
    %vm38 = vcmp.lt.s32.totalorder %v36, 96
    %vm39 = vmand %vm37, %vm38
    %v40 = vadd.s32 %v31, 1
    %vm41 = vcmp.ge.s32.totalorder %v40, 0
    %vm42 = vcmp.lt.s32.totalorder %v40, 96
    %vm43 = vmand %vm41, %vm42
    %v44 = vadd.s32 %v31, 2
    %vm45 = vcmp.ge.s32.totalorder %v44, 0
    %vm46 = vcmp.lt.s32.totalorder %v44, 96
    %vm47 = vmand %vm45, %vm46
    %52 = vrot.lane.b32.xlu0 %v27, 1
    %v53 = vpop.permute.xlu0 %52
    %54 = vrot.lane.b32.xlu0 %v28, 1
    %v55 = vpop.permute.xlu0 %54
    %56 = vrot.lane.b32.xlu0 %v29, 1
    %v57 = vpop.permute.xlu0 %56
    %58 = vrot.lane.b32.xlu0 %v30, 1
    %v59 = vpop.permute.xlu0 %58
    %vm60 = vcmask 7168
    %v61 = vsel %vm60, %v53, %v55
    %v62 = vsel %vm60, %v55, %v57
    %v63 = vsel %vm60, %v57, %v59
    %v68 = vsel %vm60, 0.0, %v53
    %v69 = vsel %vm39, 1, 0
    %v70 = vperm.slane %v69, 0
    %v71 = vperm.slane %v69, 1
    %v72 = vperm.slane %v69, 2
    %v73 = vperm.slane %v69, 3
    %vm74 = vcmp.eq.s32.totalorder %v70, 1
    %vm75 = vcmp.eq.s32.totalorder %v71, 1
    %vm76 = vcmp.eq.s32.totalorder %v72, 1
    %vm77 = vcmp.eq.s32.totalorder %v73, 1
    %v78 = vsel %vm74, %v68, -inf
    %v79 = vsel %vm75, %v61, -inf
    %v80 = vsel %vm76, %v62, -inf
    %v81 = vsel %vm77, %v63, -inf
    %v82 = vmax.f32 %v78, %v27
    %v83 = vmax.f32 %v79, %v28
    %v84 = vmax.f32 %v80, %v29
    %v85 = vmax.f32 %v81, %v30
    %86 = vrot.lane.b32.xlu0 %v27, 127
    %v87 = vpop.permute.xlu0 %86
    %88 = vrot.lane.b32.xlu0 %v28, 127
    %v89 = vpop.permute.xlu0 %88
    %90 = vrot.lane.b32.xlu0 %v29, 127
    %v91 = vpop.permute.xlu0 %90
    %92 = vrot.lane.b32.xlu0 %v30, 127
    %v93 = vpop.permute.xlu0 %92
    %vm94 = vcmask 1039360
    %v95 = vsel %vm94, %v87, %v89
    %v96 = vsel %vm94, %v89, %v91
    %v97 = vsel %vm94, %v91, %v93
    %v102 = vsel %vm94, %v93, 0.0
    %v103 = vsel %vm43, 1, 0
    %v104 = vperm.slane %v103, 0
    %v105 = vperm.slane %v103, 1
    %v106 = vperm.slane %v103, 2
    %v107 = vperm.slane %v103, 3
    %vm108 = vcmp.eq.s32.totalorder %v104, 1
    %vm109 = vcmp.eq.s32.totalorder %v105, 1
    %vm110 = vcmp.eq.s32.totalorder %v106, 1
    %vm111 = vcmp.eq.s32.totalorder %v107, 1
    %v112 = vsel %vm108, %v95, -inf
    %v113 = vsel %vm109, %v96, -inf
    %v114 = vsel %vm110, %v97, -inf
    %v115 = vsel %vm111, %v102, -inf
    %v116 = vmax.f32 %v82, %v112
    %v117 = vmax.f32 %v83, %v113
    %v118 = vmax.f32 %v84, %v114
    %v119 = vmax.f32 %v85, %v115
    %v120 = vld [vmem:[%s2] sm:$0xff]
    %v121 = vld [vmem:[%s2 + $0x8] sm:$0xff]
    %v122 = vld [vmem:[%s2 + $0x10] sm:$0xff]
    %v123 = vld [vmem:[%s2 + $0x18] sm:$0xff]
    %v124 = vld [vmem:[%s2 + $0x20] sm:$0xff]
    %v125 = vld [vmem:[%s2 + $0x28] sm:$0xff]
    %v126 = vld [vmem:[%s2 + $0x30] sm:$0xff]
    %v127 = vld [vmem:[%s2 + $0x38] sm:$0xff]
    %v128 = vld [vmem:[%s2 + $0x40] sm:$0xff]
    %v129 = vld [vmem:[%s2 + $0x48] sm:$0xff]
    %v130 = vld [vmem:[%s2 + $0x50] sm:$0xff]
    %v131 = vld [vmem:[%s2 + $0x58] sm:$0xff]
    %v132 = vld [vmem:[%s2 + $0x60] sm:$0xff]
    %v133 = vld [vmem:[%s2 + $0x68] sm:$0xff]
    %v134 = vld [vmem:[%s2 + $0x70] sm:$0xff]
    %v135 = vld [vmem:[%s2 + $0x78] sm:$0xff]
    %v136 = vld [vmem:[%s3] sm:$0xff]
    %v137 = vld [vmem:[%s3 + $0x8] sm:$0xff]
    %v138 = vld [vmem:[%s3 + $0x10] sm:$0xff]
    %v139 = vld [vmem:[%s3 + $0x18] sm:$0xff]
    %v140 = vld [vmem:[%s3 + $0x20] sm:$0xff]
    %v141 = vld [vmem:[%s3 + $0x28] sm:$0xff]
    %v142 = vld [vmem:[%s3 + $0x30] sm:$0xff]
    %v143 = vld [vmem:[%s3 + $0x38] sm:$0xff]
    %v144 = vld [vmem:[%s3 + $0x40] sm:$0xff]
    %v145 = vld [vmem:[%s3 + $0x48] sm:$0xff]
    %v146 = vld [vmem:[%s3 + $0x50] sm:$0xff]
    %v147 = vld [vmem:[%s3 + $0x58] sm:$0xff]
    %v148 = vld [vmem:[%s3 + $0x60] sm:$0xff]
    %v149 = vld [vmem:[%s3 + $0x68] sm:$0xff]
    %v150 = vld [vmem:[%s3 + $0x70] sm:$0xff]
    %v151 = vld [vmem:[%s3 + $0x78] sm:$0xff]
    %153 = vset.pattern.permute.xlu0 0
    %154 = vperm.xlu0 %153, %v136
    %v155 = vpop.permute.xlu0 %154
    %158 = vset.pattern.permute.xlu0 0
    %159 = vperm.xlu0 %158, %v137
    %v160 = vpop.permute.xlu0 %159
    %163 = vset.pattern.permute.xlu0 0
    %164 = vperm.xlu0 %163, %v138
    %v165 = vpop.permute.xlu0 %164
    %168 = vset.pattern.permute.xlu0 0
    %169 = vperm.xlu0 %168, %v139
    %v170 = vpop.permute.xlu0 %169
    %173 = vset.pattern.permute.xlu0 0
    %174 = vperm.xlu0 %173, %v140
    %v175 = vpop.permute.xlu0 %174
    %178 = vset.pattern.permute.xlu0 0
    %179 = vperm.xlu0 %178, %v141
    %v180 = vpop.permute.xlu0 %179
    %183 = vset.pattern.permute.xlu0 0
    %184 = vperm.xlu0 %183, %v142
    %v185 = vpop.permute.xlu0 %184
    %188 = vset.pattern.permute.xlu0 0
    %189 = vperm.xlu0 %188, %v143
    %v190 = vpop.permute.xlu0 %189
    %193 = vset.pattern.permute.xlu0 0
    %194 = vperm.xlu0 %193, %v144
    %v195 = vpop.permute.xlu0 %194
    %198 = vset.pattern.permute.xlu0 0
    %199 = vperm.xlu0 %198, %v145
    %v200 = vpop.permute.xlu0 %199
    %203 = vset.pattern.permute.xlu0 0
    %204 = vperm.xlu0 %203, %v146
    %v205 = vpop.permute.xlu0 %204
    %208 = vset.pattern.permute.xlu0 0
    %209 = vperm.xlu0 %208, %v147
    %v210 = vpop.permute.xlu0 %209
    %213 = vset.pattern.permute.xlu0 0
    %214 = vperm.xlu0 %213, %v148
    %v215 = vpop.permute.xlu0 %214
    %218 = vset.pattern.permute.xlu0 0
    %219 = vperm.xlu0 %218, %v149
    %v220 = vpop.permute.xlu0 %219
    %223 = vset.pattern.permute.xlu0 0
    %224 = vperm.xlu0 %223, %v150
    %v225 = vpop.permute.xlu0 %224
    %228 = vset.pattern.permute.xlu0 0
    %229 = vperm.xlu0 %228, %v151
    %v230 = vpop.permute.xlu0 %229
    %vm232 = vcmask 130048
    %v234 = vsel %vm232, %v120, 0
    %v237 = vsel %vm232, %v121, 0
    %v240 = vsel %vm232, %v122, 0
    %v243 = vsel %vm232, %v123, 0
    %v246 = vsel %vm232, %v124, 0
    %v249 = vsel %vm232, %v125, 0
    %v252 = vsel %vm232, %v126, 0
    %v255 = vsel %vm232, %v127, 0
    %v258 = vsel %vm232, %v128, 0
    %v261 = vsel %vm232, %v129, 0
    %v264 = vsel %vm232, %v130, 0
    %v267 = vsel %vm232, %v131, 0
    %v270 = vsel %vm232, %v132, 0
    %v273 = vsel %vm232, %v133, 0
    %v276 = vsel %vm232, %v134, 0
    %v279 = vsel %vm232, %v135, 0
    %281 = vmatpush.msra.mxu0 0.0
    %282 = vmatpush.msra.mxu0 0.0
    %283 = vmatpush.msra.mxu0 0.0
    %284 = vmatpush.msra.mxu0 0.0
    %285 = vmatpush.msra.mxu0 0.0
    %286 = vmatpush.msra.mxu0 0.0
    %287 = vmatpush.msra.mxu0 0.0
    %288 = vmatpush.msra.mxu0 0.0
    %289 = vmatpush.msra.mxu0 0.0
    %290 = vmatpush.msra.mxu0 0.0
    %291 = vmatpush.msra.mxu0 0.0
    %292 = vmatpush.msra.mxu0 0.0
    %293 = vmatpush.msra.mxu0 0.0
    %294 = vmatpush.msra.mxu0 0.0
    %295 = vmatpush.msra.mxu0 %v116
    %296 = vmatpush.msra.mxu0 %v27
    %297 = vmatmul.f32.gmra.mxu0 %v234
    %v298 = vpop.f32.mrf.mxu0
    %v299 = vadd.f32 %v155, %v298
    %300 = vmatmul.f32.gmra.mxu0 %v237
    %v301 = vpop.f32.mrf.mxu0
    %v302 = vadd.f32 %v160, %v301
    %303 = vmatmul.f32.gmra.mxu0 %v240
    %v304 = vpop.f32.mrf.mxu0
    %v305 = vadd.f32 %v165, %v304
    %306 = vmatmul.f32.gmra.mxu0 %v243
    %v307 = vpop.f32.mrf.mxu0
    %v308 = vadd.f32 %v170, %v307
    %309 = vmatmul.f32.gmra.mxu0 %v246
    %v310 = vpop.f32.mrf.mxu0
    %v311 = vadd.f32 %v175, %v310
    %312 = vmatmul.f32.gmra.mxu0 %v249
    %v313 = vpop.f32.mrf.mxu0
    %v314 = vadd.f32 %v180, %v313
    %315 = vmatmul.f32.gmra.mxu0 %v252
    %v316 = vpop.f32.mrf.mxu0
    %v317 = vadd.f32 %v185, %v316
    %318 = vmatmul.f32.gmra.mxu0 %v255
    %v319 = vpop.f32.mrf.mxu0
    %v320 = vadd.f32 %v190, %v319
    %321 = vmatmul.f32.gmra.mxu0 %v258
    %v322 = vpop.f32.mrf.mxu0
    %v323 = vadd.f32 %v195, %v322
    %324 = vmatmul.f32.gmra.mxu0 %v261
    %v325 = vpop.f32.mrf.mxu0
    %v326 = vadd.f32 %v200, %v325
    %327 = vmatmul.f32.gmra.mxu0 %v264
    %v328 = vpop.f32.mrf.mxu0
    %v329 = vadd.f32 %v205, %v328
    %330 = vmatmul.f32.gmra.mxu0 %v267
    %v331 = vpop.f32.mrf.mxu0
    %v332 = vadd.f32 %v210, %v331
    %333 = vmatmul.f32.gmra.mxu0 %v270
    %v334 = vpop.f32.mrf.mxu0
    %v335 = vadd.f32 %v215, %v334
    %336 = vmatmul.f32.gmra.mxu0 %v273
    %v337 = vpop.f32.mrf.mxu0
    %v338 = vadd.f32 %v220, %v337
    %339 = vmatmul.f32.gmra.mxu0 %v276
    %v340 = vpop.f32.mrf.mxu0
    %v341 = vadd.f32 %v225, %v340
    %342 = vmatmul.f32.gmra.mxu0 %v279
    %v343 = vpop.f32.mrf.mxu0
    %v344 = vadd.f32 %v230, %v343
    %345 = vdwg.mxu0
    %346 = vmatpush.msra.mxu0 0.0
    %347 = vmatpush.msra.mxu0 0.0
    %348 = vmatpush.msra.mxu0 0.0
    %349 = vmatpush.msra.mxu0 0.0
    %350 = vmatpush.msra.mxu0 0.0
    %351 = vmatpush.msra.mxu0 0.0
    %352 = vmatpush.msra.mxu0 0.0
    %353 = vmatpush.msra.mxu0 0.0
    %354 = vmatpush.msra.mxu0 0.0
    %355 = vmatpush.msra.mxu0 0.0
    %356 = vmatpush.msra.mxu0 0.0
    %357 = vmatpush.msra.mxu0 0.0
    %358 = vmatpush.msra.mxu0 0.0
    %359 = vmatpush.msra.mxu0 0.0
    %360 = vmatpush.msra.mxu0 %v117
    %361 = vmatpush.msra.mxu0 %v28
    %362 = vmatmul.f32.gmra.mxu0 %v234
    %v363 = vpop.f32.mrf.mxu0
    %v364 = vadd.f32 %v155, %v363
    %365 = vmatmul.f32.gmra.mxu0 %v237
    %v366 = vpop.f32.mrf.mxu0
    %v367 = vadd.f32 %v160, %v366
    %368 = vmatmul.f32.gmra.mxu0 %v240
    %v369 = vpop.f32.mrf.mxu0
    %v370 = vadd.f32 %v165, %v369
    %371 = vmatmul.f32.gmra.mxu0 %v243
    %v372 = vpop.f32.mrf.mxu0
    %v373 = vadd.f32 %v170, %v372
    %374 = vmatmul.f32.gmra.mxu0 %v246
    %v375 = vpop.f32.mrf.mxu0
    %v376 = vadd.f32 %v175, %v375
    %377 = vmatmul.f32.gmra.mxu0 %v249
    %v378 = vpop.f32.mrf.mxu0
    %v379 = vadd.f32 %v180, %v378
    %380 = vmatmul.f32.gmra.mxu0 %v252
    %v381 = vpop.f32.mrf.mxu0
    %v382 = vadd.f32 %v185, %v381
    %383 = vmatmul.f32.gmra.mxu0 %v255
    %v384 = vpop.f32.mrf.mxu0
    %v385 = vadd.f32 %v190, %v384
    %386 = vmatmul.f32.gmra.mxu0 %v258
    %v387 = vpop.f32.mrf.mxu0
    %v388 = vadd.f32 %v195, %v387
    %389 = vmatmul.f32.gmra.mxu0 %v261
    %v390 = vpop.f32.mrf.mxu0
    %v391 = vadd.f32 %v200, %v390
    %392 = vmatmul.f32.gmra.mxu0 %v264
    %v393 = vpop.f32.mrf.mxu0
    %v394 = vadd.f32 %v205, %v393
    %395 = vmatmul.f32.gmra.mxu0 %v267
    %v396 = vpop.f32.mrf.mxu0
    %v397 = vadd.f32 %v210, %v396
    %398 = vmatmul.f32.gmra.mxu0 %v270
    %v399 = vpop.f32.mrf.mxu0
    %v400 = vadd.f32 %v215, %v399
    %401 = vmatmul.f32.gmra.mxu0 %v273
    %v402 = vpop.f32.mrf.mxu0
    %v403 = vadd.f32 %v220, %v402
    %404 = vmatmul.f32.gmra.mxu0 %v276
    %v405 = vpop.f32.mrf.mxu0
    %v406 = vadd.f32 %v225, %v405
    %407 = vmatmul.f32.gmra.mxu0 %v279
    %v408 = vpop.f32.mrf.mxu0
    %v409 = vadd.f32 %v230, %v408
    %410 = vdwg.mxu0
    %411 = vmatpush.msra.mxu0 0.0
    %412 = vmatpush.msra.mxu0 0.0
    %413 = vmatpush.msra.mxu0 0.0
    %414 = vmatpush.msra.mxu0 0.0
    %415 = vmatpush.msra.mxu0 0.0
    %416 = vmatpush.msra.mxu0 0.0
    %417 = vmatpush.msra.mxu0 0.0
    %418 = vmatpush.msra.mxu0 0.0
    %419 = vmatpush.msra.mxu0 0.0
    %420 = vmatpush.msra.mxu0 0.0
    %421 = vmatpush.msra.mxu0 0.0
    %422 = vmatpush.msra.mxu0 0.0
    %423 = vmatpush.msra.mxu0 0.0
    %424 = vmatpush.msra.mxu0 0.0
    %425 = vmatpush.msra.mxu0 %v118
    %426 = vmatpush.msra.mxu0 %v29
    %427 = vmatmul.f32.gmra.mxu0 %v234
    %v428 = vpop.f32.mrf.mxu0
    %v429 = vadd.f32 %v155, %v428
    %430 = vmatmul.f32.gmra.mxu0 %v237
    %v431 = vpop.f32.mrf.mxu0
    %v432 = vadd.f32 %v160, %v431
    %433 = vmatmul.f32.gmra.mxu0 %v240
    %v434 = vpop.f32.mrf.mxu0
    %v435 = vadd.f32 %v165, %v434
    %436 = vmatmul.f32.gmra.mxu0 %v243
    %v437 = vpop.f32.mrf.mxu0
    %v438 = vadd.f32 %v170, %v437
    %439 = vmatmul.f32.gmra.mxu0 %v246
    %v440 = vpop.f32.mrf.mxu0
    %v441 = vadd.f32 %v175, %v440
    %442 = vmatmul.f32.gmra.mxu0 %v249
    %v443 = vpop.f32.mrf.mxu0
    %v444 = vadd.f32 %v180, %v443
    %445 = vmatmul.f32.gmra.mxu0 %v252
    %v446 = vpop.f32.mrf.mxu0
    %v447 = vadd.f32 %v185, %v446
    %448 = vmatmul.f32.gmra.mxu0 %v255
    %v449 = vpop.f32.mrf.mxu0
    %v450 = vadd.f32 %v190, %v449
    %451 = vmatmul.f32.gmra.mxu0 %v258
    %v452 = vpop.f32.mrf.mxu0
    %v453 = vadd.f32 %v195, %v452
    %454 = vmatmul.f32.gmra.mxu0 %v261
    %v455 = vpop.f32.mrf.mxu0
    %v456 = vadd.f32 %v200, %v455
    %457 = vmatmul.f32.gmra.mxu0 %v264
    %v458 = vpop.f32.mrf.mxu0
    %v459 = vadd.f32 %v205, %v458
    %460 = vmatmul.f32.gmra.mxu0 %v267
    %v461 = vpop.f32.mrf.mxu0
    %v462 = vadd.f32 %v210, %v461
    %463 = vmatmul.f32.gmra.mxu0 %v270
    %v464 = vpop.f32.mrf.mxu0
    %v465 = vadd.f32 %v215, %v464
    %466 = vmatmul.f32.gmra.mxu0 %v273
    %v467 = vpop.f32.mrf.mxu0
    %v468 = vadd.f32 %v220, %v467
    %469 = vmatmul.f32.gmra.mxu0 %v276
    %v470 = vpop.f32.mrf.mxu0
    %v471 = vadd.f32 %v225, %v470
    %472 = vmatmul.f32.gmra.mxu0 %v279
    %v473 = vpop.f32.mrf.mxu0
    %v474 = vadd.f32 %v230, %v473
    %475 = vdwg.mxu0
    %476 = vmatpush.msra.mxu0 0.0
    %477 = vmatpush.msra.mxu0 0.0
    %478 = vmatpush.msra.mxu0 0.0
    %479 = vmatpush.msra.mxu0 0.0
    %480 = vmatpush.msra.mxu0 0.0
    %481 = vmatpush.msra.mxu0 0.0
    %482 = vmatpush.msra.mxu0 0.0
    %483 = vmatpush.msra.mxu0 0.0
    %484 = vmatpush.msra.mxu0 0.0
    %485 = vmatpush.msra.mxu0 0.0
    %486 = vmatpush.msra.mxu0 0.0
    %487 = vmatpush.msra.mxu0 0.0
    %488 = vmatpush.msra.mxu0 0.0
    %489 = vmatpush.msra.mxu0 0.0
    %490 = vmatpush.msra.mxu0 %v119
    %491 = vmatpush.msra.mxu0 %v30
    %492 = vmatmul.f32.gmra.mxu0 %v234
    %v493 = vpop.f32.mrf.mxu0
    %v494 = vadd.f32 %v155, %v493
    %495 = vmatmul.f32.gmra.mxu0 %v237
    %v496 = vpop.f32.mrf.mxu0
    %v497 = vadd.f32 %v160, %v496
    %498 = vmatmul.f32.gmra.mxu0 %v240
    %v499 = vpop.f32.mrf.mxu0
    %v500 = vadd.f32 %v165, %v499
    %501 = vmatmul.f32.gmra.mxu0 %v243
    %v502 = vpop.f32.mrf.mxu0
    %v503 = vadd.f32 %v170, %v502
    %504 = vmatmul.f32.gmra.mxu0 %v246
    %v505 = vpop.f32.mrf.mxu0
    %v506 = vadd.f32 %v175, %v505
    %507 = vmatmul.f32.gmra.mxu0 %v249
    %v508 = vpop.f32.mrf.mxu0
    %v509 = vadd.f32 %v180, %v508
    %510 = vmatmul.f32.gmra.mxu0 %v252
    %v511 = vpop.f32.mrf.mxu0
    %v512 = vadd.f32 %v185, %v511
    %513 = vmatmul.f32.gmra.mxu0 %v255
    %v514 = vpop.f32.mrf.mxu0
    %v515 = vadd.f32 %v190, %v514
    %516 = vmatmul.f32.gmra.mxu0 %v258
    %v517 = vpop.f32.mrf.mxu0
    %v518 = vadd.f32 %v195, %v517
    %519 = vmatmul.f32.gmra.mxu0 %v261
    %v520 = vpop.f32.mrf.mxu0
    %v521 = vadd.f32 %v200, %v520
    %522 = vmatmul.f32.gmra.mxu0 %v264
    %v523 = vpop.f32.mrf.mxu0
    %v524 = vadd.f32 %v205, %v523
    %525 = vmatmul.f32.gmra.mxu0 %v267
    %v526 = vpop.f32.mrf.mxu0
    %v527 = vadd.f32 %v210, %v526
    %528 = vmatmul.f32.gmra.mxu0 %v270
    %v529 = vpop.f32.mrf.mxu0
    %v530 = vadd.f32 %v215, %v529
    %531 = vmatmul.f32.gmra.mxu0 %v273
    %v532 = vpop.f32.mrf.mxu0
    %v533 = vadd.f32 %v220, %v532
    %534 = vmatmul.f32.gmra.mxu0 %v276
    %v535 = vpop.f32.mrf.mxu0
    %v536 = vadd.f32 %v225, %v535
    %537 = vmatmul.f32.gmra.mxu0 %v279
    %v538 = vpop.f32.mrf.mxu0
    %v539 = vadd.f32 %v230, %v538
    %540 = vdwg.mxu0
    %v541 = vld [vmem:[%s4] sm:$0xff]
    %v542 = vld [vmem:[%s4 + $0x8] sm:$0xff]
    %v543 = vld [vmem:[%s4 + $0x10] sm:$0xff]
    %v544 = vld [vmem:[%s4 + $0x18] sm:$0xff]
    %v545 = vld [vmem:[%s4 + $0x20] sm:$0xff]
    %v546 = vld [vmem:[%s4 + $0x28] sm:$0xff]
    %v547 = vld [vmem:[%s4 + $0x30] sm:$0xff]
    %v548 = vld [vmem:[%s4 + $0x38] sm:$0xff]
    %v549 = vld [vmem:[%s4 + $0x40] sm:$0xff]
    %v550 = vld [vmem:[%s4 + $0x48] sm:$0xff]
    %v551 = vld [vmem:[%s4 + $0x50] sm:$0xff]
    %v552 = vld [vmem:[%s4 + $0x58] sm:$0xff]
    %v553 = vld [vmem:[%s4 + $0x60] sm:$0xff]
    %v554 = vld [vmem:[%s4 + $0x68] sm:$0xff]
    %v555 = vld [vmem:[%s4 + $0x70] sm:$0xff]
    %v556 = vld [vmem:[%s4 + $0x78] sm:$0xff]
    %v557 = vld [vmem:[%s4 + $0x80] sm:$0xff]
    %v558 = vld [vmem:[%s4 + $0x88] sm:$0xff]
    %v559 = vld [vmem:[%s4 + $0x90] sm:$0xff]
    %v560 = vld [vmem:[%s4 + $0x98] sm:$0xff]
    %v561 = vld [vmem:[%s4 + $0xa0] sm:$0xff]
    %v562 = vld [vmem:[%s4 + $0xa8] sm:$0xff]
    %v563 = vld [vmem:[%s4 + $0xb0] sm:$0xff]
    %v564 = vld [vmem:[%s4 + $0xb8] sm:$0xff]
    %v565 = vld [vmem:[%s4 + $0xc0] sm:$0xff]
    %v566 = vld [vmem:[%s4 + $0xc8] sm:$0xff]
    %v567 = vld [vmem:[%s4 + $0xd0] sm:$0xff]
    %v568 = vld [vmem:[%s4 + $0xd8] sm:$0xff]
    %v569 = vld [vmem:[%s4 + $0xe0] sm:$0xff]
    %v570 = vld [vmem:[%s4 + $0xe8] sm:$0xff]
    %v571 = vld [vmem:[%s4 + $0xf0] sm:$0xff]
    %v572 = vld [vmem:[%s4 + $0xf8] sm:$0xff]
    %vm573 = vcmask 523264
    %v575 = vsel %vm573, %v541, 0
    %v578 = vsel %vm573, %v542, 0
    %v581 = vsel %vm573, %v543, 0
    %v584 = vsel %vm573, %v544, 0
    %v587 = vsel %vm573, %v545, 0
    %v590 = vsel %vm573, %v546, 0
    %v593 = vsel %vm573, %v547, 0
    %v596 = vsel %vm573, %v548, 0
    %v599 = vsel %vm573, %v549, 0
    %v602 = vsel %vm573, %v550, 0
    %v605 = vsel %vm573, %v551, 0
    %v608 = vsel %vm573, %v552, 0
    %v611 = vsel %vm573, %v553, 0
    %v614 = vsel %vm573, %v554, 0
    %v617 = vsel %vm573, %v555, 0
    %v620 = vsel %vm573, %v556, 0
    %v623 = vsel %vm573, %v557, 0
    %v626 = vsel %vm573, %v558, 0
    %v629 = vsel %vm573, %v559, 0
    %v632 = vsel %vm573, %v560, 0
    %v635 = vsel %vm573, %v561, 0
    %v638 = vsel %vm573, %v562, 0
    %v641 = vsel %vm573, %v563, 0
    %v644 = vsel %vm573, %v564, 0
    %v647 = vsel %vm573, %v565, 0
    %v650 = vsel %vm573, %v566, 0
    %v653 = vsel %vm573, %v567, 0
    %v656 = vsel %vm573, %v568, 0
    %v659 = vsel %vm573, %v569, 0
    %v662 = vsel %vm573, %v570, 0
    %v665 = vsel %vm573, %v571, 0
    %v668 = vsel %vm573, %v572, 0
    %670 = vmatpush.msra.mxu0 0.0
    %671 = vmatpush.msra.mxu0 0.0
    %672 = vmatpush.msra.mxu0 0.0
    %673 = vmatpush.msra.mxu0 0.0
    %674 = vmatpush.msra.mxu0 0.0
    %675 = vmatpush.msra.mxu0 0.0
    %676 = vmatpush.msra.mxu0 0.0
    %677 = vmatpush.msra.mxu0 0.0
    %678 = vmatpush.msra.mxu0 %v332
    %679 = vmatpush.msra.mxu0 %v329
    %680 = vmatpush.msra.mxu0 %v326
    %681 = vmatpush.msra.mxu0 %v323
    %682 = vmatpush.msra.mxu0 %v320
    %683 = vmatpush.msra.mxu0 %v317
    %684 = vmatpush.msra.mxu0 %v314
    %685 = vmatpush.msra.mxu0 %v311
    %686 = vmatmul.f32.gmra.mxu0 %v575
    %v687 = vpop.f32.mrf.mxu0
    %v688 = vadd.f32 0.0, %v687
    %689 = vmatmul.f32.gmra.mxu0 %v578
    %v690 = vpop.f32.mrf.mxu0
    %v691 = vadd.f32 0.0, %v690
    %692 = vmatmul.f32.gmra.mxu0 %v581
    %v693 = vpop.f32.mrf.mxu0
    %v694 = vadd.f32 0.0, %v693
    %695 = vmatmul.f32.gmra.mxu0 %v584
    %v696 = vpop.f32.mrf.mxu0
    %v697 = vadd.f32 0.0, %v696
    %698 = vmatmul.f32.gmra.mxu0 %v587
    %v699 = vpop.f32.mrf.mxu0
    %v700 = vadd.f32 0.0, %v699
    %701 = vmatmul.f32.gmra.mxu0 %v590
    %v702 = vpop.f32.mrf.mxu0
    %v703 = vadd.f32 0.0, %v702
    %704 = vmatmul.f32.gmra.mxu0 %v593
    %v705 = vpop.f32.mrf.mxu0
    %v706 = vadd.f32 0.0, %v705
    %707 = vmatmul.f32.gmra.mxu0 %v596
    %v708 = vpop.f32.mrf.mxu0
    %v709 = vadd.f32 0.0, %v708
    %710 = vmatmul.f32.gmra.mxu0 %v599
    %v711 = vpop.f32.mrf.mxu0
    %v712 = vadd.f32 0.0, %v711
    %713 = vmatmul.f32.gmra.mxu0 %v602
    %v714 = vpop.f32.mrf.mxu0
    %v715 = vadd.f32 0.0, %v714
    %716 = vmatmul.f32.gmra.mxu0 %v605
    %v717 = vpop.f32.mrf.mxu0
    %v718 = vadd.f32 0.0, %v717
    %719 = vmatmul.f32.gmra.mxu0 %v608
    %v720 = vpop.f32.mrf.mxu0
    %v721 = vadd.f32 0.0, %v720
    %722 = vmatmul.f32.gmra.mxu0 %v611
    %v723 = vpop.f32.mrf.mxu0
    %v724 = vadd.f32 0.0, %v723
    %725 = vmatmul.f32.gmra.mxu0 %v614
    %v726 = vpop.f32.mrf.mxu0
    %v727 = vadd.f32 0.0, %v726
    %728 = vmatmul.f32.gmra.mxu0 %v617
    %v729 = vpop.f32.mrf.mxu0
    %v730 = vadd.f32 0.0, %v729
    %731 = vmatmul.f32.gmra.mxu0 %v620
    %v732 = vpop.f32.mrf.mxu0
    %v733 = vadd.f32 0.0, %v732
    %734 = vmatmul.f32.gmra.mxu0 %v623
    %v735 = vpop.f32.mrf.mxu0
    %v736 = vadd.f32 0.0, %v735
    %737 = vmatmul.f32.gmra.mxu0 %v626
    %v738 = vpop.f32.mrf.mxu0
    %v739 = vadd.f32 0.0, %v738
    %740 = vmatmul.f32.gmra.mxu0 %v629
    %v741 = vpop.f32.mrf.mxu0
    %v742 = vadd.f32 0.0, %v741
    %743 = vmatmul.f32.gmra.mxu0 %v632
    %v744 = vpop.f32.mrf.mxu0
    %v745 = vadd.f32 0.0, %v744
    %746 = vmatmul.f32.gmra.mxu0 %v635
    %v747 = vpop.f32.mrf.mxu0
    %v748 = vadd.f32 0.0, %v747
    %749 = vmatmul.f32.gmra.mxu0 %v638
    %v750 = vpop.f32.mrf.mxu0
    %v751 = vadd.f32 0.0, %v750
    %752 = vmatmul.f32.gmra.mxu0 %v641
    %v753 = vpop.f32.mrf.mxu0
    %v754 = vadd.f32 0.0, %v753
    %755 = vmatmul.f32.gmra.mxu0 %v644
    %v756 = vpop.f32.mrf.mxu0
    %v757 = vadd.f32 0.0, %v756
    %758 = vmatmul.f32.gmra.mxu0 %v647
    %v759 = vpop.f32.mrf.mxu0
    %v760 = vadd.f32 0.0, %v759
    %761 = vmatmul.f32.gmra.mxu0 %v650
    %v762 = vpop.f32.mrf.mxu0
    %v763 = vadd.f32 0.0, %v762
    %764 = vmatmul.f32.gmra.mxu0 %v653
    %v765 = vpop.f32.mrf.mxu0
    %v766 = vadd.f32 0.0, %v765
    %767 = vmatmul.f32.gmra.mxu0 %v656
    %v768 = vpop.f32.mrf.mxu0
    %v769 = vadd.f32 0.0, %v768
    %770 = vmatmul.f32.gmra.mxu0 %v659
    %v771 = vpop.f32.mrf.mxu0
    %v772 = vadd.f32 0.0, %v771
    %773 = vmatmul.f32.gmra.mxu0 %v662
    %v774 = vpop.f32.mrf.mxu0
    %v775 = vadd.f32 0.0, %v774
    %776 = vmatmul.f32.gmra.mxu0 %v665
    %v777 = vpop.f32.mrf.mxu0
    %v778 = vadd.f32 0.0, %v777
    %779 = vmatmul.f32.gmra.mxu0 %v668
    %v780 = vpop.f32.mrf.mxu0
    %v781 = vadd.f32 0.0, %v780
    %782 = vdwg.mxu0
    %783 = vmatpush.msra.mxu0 0.0
    %784 = vmatpush.msra.mxu0 0.0
    %785 = vmatpush.msra.mxu0 0.0
    %786 = vmatpush.msra.mxu0 0.0
    %787 = vmatpush.msra.mxu0 0.0
    %788 = vmatpush.msra.mxu0 0.0
    %789 = vmatpush.msra.mxu0 0.0
    %790 = vmatpush.msra.mxu0 0.0
    %791 = vmatpush.msra.mxu0 %v397
    %792 = vmatpush.msra.mxu0 %v394
    %793 = vmatpush.msra.mxu0 %v391
    %794 = vmatpush.msra.mxu0 %v388
    %795 = vmatpush.msra.mxu0 %v385
    %796 = vmatpush.msra.mxu0 %v382
    %797 = vmatpush.msra.mxu0 %v379
    %798 = vmatpush.msra.mxu0 %v376
    %799 = vmatmul.f32.gmra.mxu0 %v575
    %v800 = vpop.f32.mrf.mxu0
    %v801 = vadd.f32 0.0, %v800
    %802 = vmatmul.f32.gmra.mxu0 %v578
    %v803 = vpop.f32.mrf.mxu0
    %v804 = vadd.f32 0.0, %v803
    %805 = vmatmul.f32.gmra.mxu0 %v581
    %v806 = vpop.f32.mrf.mxu0
    %v807 = vadd.f32 0.0, %v806
    %808 = vmatmul.f32.gmra.mxu0 %v584
    %v809 = vpop.f32.mrf.mxu0
    %v810 = vadd.f32 0.0, %v809
    %811 = vmatmul.f32.gmra.mxu0 %v587
    %v812 = vpop.f32.mrf.mxu0
    %v813 = vadd.f32 0.0, %v812
    %814 = vmatmul.f32.gmra.mxu0 %v590
    %v815 = vpop.f32.mrf.mxu0
    %v816 = vadd.f32 0.0, %v815
    %817 = vmatmul.f32.gmra.mxu0 %v593
    %v818 = vpop.f32.mrf.mxu0
    %v819 = vadd.f32 0.0, %v818
    %820 = vmatmul.f32.gmra.mxu0 %v596
    %v821 = vpop.f32.mrf.mxu0
    %v822 = vadd.f32 0.0, %v821
    %823 = vmatmul.f32.gmra.mxu0 %v599
    %v824 = vpop.f32.mrf.mxu0
    %v825 = vadd.f32 0.0, %v824
    %826 = vmatmul.f32.gmra.mxu0 %v602
    %v827 = vpop.f32.mrf.mxu0
    %v828 = vadd.f32 0.0, %v827
    %829 = vmatmul.f32.gmra.mxu0 %v605
    %v830 = vpop.f32.mrf.mxu0
    %v831 = vadd.f32 0.0, %v830
    %832 = vmatmul.f32.gmra.mxu0 %v608
    %v833 = vpop.f32.mrf.mxu0
    %v834 = vadd.f32 0.0, %v833
    %835 = vmatmul.f32.gmra.mxu0 %v611
    %v836 = vpop.f32.mrf.mxu0
    %v837 = vadd.f32 0.0, %v836
    %838 = vmatmul.f32.gmra.mxu0 %v614
    %v839 = vpop.f32.mrf.mxu0
    %v840 = vadd.f32 0.0, %v839
    %841 = vmatmul.f32.gmra.mxu0 %v617
    %v842 = vpop.f32.mrf.mxu0
    %v843 = vadd.f32 0.0, %v842
    %844 = vmatmul.f32.gmra.mxu0 %v620
    %v845 = vpop.f32.mrf.mxu0
    %v846 = vadd.f32 0.0, %v845
    %847 = vmatmul.f32.gmra.mxu0 %v623
    %v848 = vpop.f32.mrf.mxu0
    %v849 = vadd.f32 0.0, %v848
    %850 = vmatmul.f32.gmra.mxu0 %v626
    %v851 = vpop.f32.mrf.mxu0
    %v852 = vadd.f32 0.0, %v851
    %853 = vmatmul.f32.gmra.mxu0 %v629
    %v854 = vpop.f32.mrf.mxu0
    %v855 = vadd.f32 0.0, %v854
    %856 = vmatmul.f32.gmra.mxu0 %v632
    %v857 = vpop.f32.mrf.mxu0
    %v858 = vadd.f32 0.0, %v857
    %859 = vmatmul.f32.gmra.mxu0 %v635
    %v860 = vpop.f32.mrf.mxu0
    %v861 = vadd.f32 0.0, %v860
    %862 = vmatmul.f32.gmra.mxu0 %v638
    %v863 = vpop.f32.mrf.mxu0
    %v864 = vadd.f32 0.0, %v863
    %865 = vmatmul.f32.gmra.mxu0 %v641
    %v866 = vpop.f32.mrf.mxu0
    %v867 = vadd.f32 0.0, %v866
    %868 = vmatmul.f32.gmra.mxu0 %v644
    %v869 = vpop.f32.mrf.mxu0
    %v870 = vadd.f32 0.0, %v869
    %871 = vmatmul.f32.gmra.mxu0 %v647
    %v872 = vpop.f32.mrf.mxu0
    %v873 = vadd.f32 0.0, %v872
    %874 = vmatmul.f32.gmra.mxu0 %v650
    %v875 = vpop.f32.mrf.mxu0
    %v876 = vadd.f32 0.0, %v875
    %877 = vmatmul.f32.gmra.mxu0 %v653
    %v878 = vpop.f32.mrf.mxu0
    %v879 = vadd.f32 0.0, %v878
    %880 = vmatmul.f32.gmra.mxu0 %v656
    %v881 = vpop.f32.mrf.mxu0
    %v882 = vadd.f32 0.0, %v881
    %883 = vmatmul.f32.gmra.mxu0 %v659
    %v884 = vpop.f32.mrf.mxu0
    %v885 = vadd.f32 0.0, %v884
    %886 = vmatmul.f32.gmra.mxu0 %v662
    %v887 = vpop.f32.mrf.mxu0
    %v888 = vadd.f32 0.0, %v887
    %889 = vmatmul.f32.gmra.mxu0 %v665
    %v890 = vpop.f32.mrf.mxu0
    %v891 = vadd.f32 0.0, %v890
    %892 = vmatmul.f32.gmra.mxu0 %v668
    %v893 = vpop.f32.mrf.mxu0
    %v894 = vadd.f32 0.0, %v893
    %895 = vdwg.mxu0
    %896 = vmatpush.msra.mxu0 0.0
    %897 = vmatpush.msra.mxu0 0.0
    %898 = vmatpush.msra.mxu0 0.0
    %899 = vmatpush.msra.mxu0 0.0
    %900 = vmatpush.msra.mxu0 0.0
    %901 = vmatpush.msra.mxu0 0.0
    %902 = vmatpush.msra.mxu0 0.0
    %903 = vmatpush.msra.mxu0 0.0
    %904 = vmatpush.msra.mxu0 %v462
    %905 = vmatpush.msra.mxu0 %v459
    %906 = vmatpush.msra.mxu0 %v456
    %907 = vmatpush.msra.mxu0 %v453
    %908 = vmatpush.msra.mxu0 %v450
    %909 = vmatpush.msra.mxu0 %v447
    %910 = vmatpush.msra.mxu0 %v444
    %911 = vmatpush.msra.mxu0 %v441
    %912 = vmatmul.f32.gmra.mxu0 %v575
    %v913 = vpop.f32.mrf.mxu0
    %v914 = vadd.f32 0.0, %v913
    %915 = vmatmul.f32.gmra.mxu0 %v578
    %v916 = vpop.f32.mrf.mxu0
    %v917 = vadd.f32 0.0, %v916
    %918 = vmatmul.f32.gmra.mxu0 %v581
    %v919 = vpop.f32.mrf.mxu0
    %v920 = vadd.f32 0.0, %v919
    %921 = vmatmul.f32.gmra.mxu0 %v584
    %v922 = vpop.f32.mrf.mxu0
    %v923 = vadd.f32 0.0, %v922
    %924 = vmatmul.f32.gmra.mxu0 %v587
    %v925 = vpop.f32.mrf.mxu0
    %v926 = vadd.f32 0.0, %v925
    %927 = vmatmul.f32.gmra.mxu0 %v590
    %v928 = vpop.f32.mrf.mxu0
    %v929 = vadd.f32 0.0, %v928
    %930 = vmatmul.f32.gmra.mxu0 %v593
    %v931 = vpop.f32.mrf.mxu0
    %v932 = vadd.f32 0.0, %v931
    %933 = vmatmul.f32.gmra.mxu0 %v596
    %v934 = vpop.f32.mrf.mxu0
    %v935 = vadd.f32 0.0, %v934
    %936 = vmatmul.f32.gmra.mxu0 %v599
    %v937 = vpop.f32.mrf.mxu0
    %v938 = vadd.f32 0.0, %v937
    %939 = vmatmul.f32.gmra.mxu0 %v602
    %v940 = vpop.f32.mrf.mxu0
    %v941 = vadd.f32 0.0, %v940
    %942 = vmatmul.f32.gmra.mxu0 %v605
    %v943 = vpop.f32.mrf.mxu0
    %v944 = vadd.f32 0.0, %v943
    %945 = vmatmul.f32.gmra.mxu0 %v608
    %v946 = vpop.f32.mrf.mxu0
    %v947 = vadd.f32 0.0, %v946
    %948 = vmatmul.f32.gmra.mxu0 %v611
    %v949 = vpop.f32.mrf.mxu0
    %v950 = vadd.f32 0.0, %v949
    %951 = vmatmul.f32.gmra.mxu0 %v614
    %v952 = vpop.f32.mrf.mxu0
    %v953 = vadd.f32 0.0, %v952
    %954 = vmatmul.f32.gmra.mxu0 %v617
    %v955 = vpop.f32.mrf.mxu0
    %v956 = vadd.f32 0.0, %v955
    %957 = vmatmul.f32.gmra.mxu0 %v620
    %v958 = vpop.f32.mrf.mxu0
    %v959 = vadd.f32 0.0, %v958
    %960 = vmatmul.f32.gmra.mxu0 %v623
    %v961 = vpop.f32.mrf.mxu0
    %v962 = vadd.f32 0.0, %v961
    %963 = vmatmul.f32.gmra.mxu0 %v626
    %v964 = vpop.f32.mrf.mxu0
    %v965 = vadd.f32 0.0, %v964
    %966 = vmatmul.f32.gmra.mxu0 %v629
    %v967 = vpop.f32.mrf.mxu0
    %v968 = vadd.f32 0.0, %v967
    %969 = vmatmul.f32.gmra.mxu0 %v632
    %v970 = vpop.f32.mrf.mxu0
    %v971 = vadd.f32 0.0, %v970
    %972 = vmatmul.f32.gmra.mxu0 %v635
    %v973 = vpop.f32.mrf.mxu0
    %v974 = vadd.f32 0.0, %v973
    %975 = vmatmul.f32.gmra.mxu0 %v638
    %v976 = vpop.f32.mrf.mxu0
    %v977 = vadd.f32 0.0, %v976
    %978 = vmatmul.f32.gmra.mxu0 %v641
    %v979 = vpop.f32.mrf.mxu0
    %v980 = vadd.f32 0.0, %v979
    %981 = vmatmul.f32.gmra.mxu0 %v644
    %v982 = vpop.f32.mrf.mxu0
    %v983 = vadd.f32 0.0, %v982
    %984 = vmatmul.f32.gmra.mxu0 %v647
    %v985 = vpop.f32.mrf.mxu0
    %v986 = vadd.f32 0.0, %v985
    %987 = vmatmul.f32.gmra.mxu0 %v650
    %v988 = vpop.f32.mrf.mxu0
    %v989 = vadd.f32 0.0, %v988
    %990 = vmatmul.f32.gmra.mxu0 %v653
    %v991 = vpop.f32.mrf.mxu0
    %v992 = vadd.f32 0.0, %v991
    %993 = vmatmul.f32.gmra.mxu0 %v656
    %v994 = vpop.f32.mrf.mxu0
    %v995 = vadd.f32 0.0, %v994
    %996 = vmatmul.f32.gmra.mxu0 %v659
    %v997 = vpop.f32.mrf.mxu0
    %v998 = vadd.f32 0.0, %v997
    %999 = vmatmul.f32.gmra.mxu0 %v662
    %v1000 = vpop.f32.mrf.mxu0
    %v1001 = vadd.f32 0.0, %v1000
    %1002 = vmatmul.f32.gmra.mxu0 %v665
    %v1003 = vpop.f32.mrf.mxu0
    %v1004 = vadd.f32 0.0, %v1003
    %1005 = vmatmul.f32.gmra.mxu0 %v668
    %v1006 = vpop.f32.mrf.mxu0
    %v1007 = vadd.f32 0.0, %v1006
    %1008 = vdwg.mxu0
    %1009 = vmatpush.msra.mxu0 0.0
    %1010 = vmatpush.msra.mxu0 0.0
    %1011 = vmatpush.msra.mxu0 0.0
    %1012 = vmatpush.msra.mxu0 0.0
    %1013 = vmatpush.msra.mxu0 0.0
    %1014 = vmatpush.msra.mxu0 0.0
    %1015 = vmatpush.msra.mxu0 0.0
    %1016 = vmatpush.msra.mxu0 0.0
    %1017 = vmatpush.msra.mxu0 %v527
    %1018 = vmatpush.msra.mxu0 %v524
    %1019 = vmatpush.msra.mxu0 %v521
    %1020 = vmatpush.msra.mxu0 %v518
    %1021 = vmatpush.msra.mxu0 %v515
    %1022 = vmatpush.msra.mxu0 %v512
    %1023 = vmatpush.msra.mxu0 %v509
    %1024 = vmatpush.msra.mxu0 %v506
    %1025 = vmatmul.f32.gmra.mxu0 %v575
    %v1026 = vpop.f32.mrf.mxu0
    %v1027 = vadd.f32 0.0, %v1026
    %1028 = vmatmul.f32.gmra.mxu0 %v578
    %v1029 = vpop.f32.mrf.mxu0
    %v1030 = vadd.f32 0.0, %v1029
    %1031 = vmatmul.f32.gmra.mxu0 %v581
    %v1032 = vpop.f32.mrf.mxu0
    %v1033 = vadd.f32 0.0, %v1032
    %1034 = vmatmul.f32.gmra.mxu0 %v584
    %v1035 = vpop.f32.mrf.mxu0
    %v1036 = vadd.f32 0.0, %v1035
    %1037 = vmatmul.f32.gmra.mxu0 %v587
    %v1038 = vpop.f32.mrf.mxu0
    %v1039 = vadd.f32 0.0, %v1038
    %1040 = vmatmul.f32.gmra.mxu0 %v590
    %v1041 = vpop.f32.mrf.mxu0
    %v1042 = vadd.f32 0.0, %v1041
    %1043 = vmatmul.f32.gmra.mxu0 %v593
    %v1044 = vpop.f32.mrf.mxu0
    %v1045 = vadd.f32 0.0, %v1044
    %1046 = vmatmul.f32.gmra.mxu0 %v596
    %v1047 = vpop.f32.mrf.mxu0
    %v1048 = vadd.f32 0.0, %v1047
    %1049 = vmatmul.f32.gmra.mxu0 %v599
    %v1050 = vpop.f32.mrf.mxu0
    %v1051 = vadd.f32 0.0, %v1050
    %1052 = vmatmul.f32.gmra.mxu0 %v602
    %v1053 = vpop.f32.mrf.mxu0
    %v1054 = vadd.f32 0.0, %v1053
    %1055 = vmatmul.f32.gmra.mxu0 %v605
    %v1056 = vpop.f32.mrf.mxu0
    %v1057 = vadd.f32 0.0, %v1056
    %1058 = vmatmul.f32.gmra.mxu0 %v608
    %v1059 = vpop.f32.mrf.mxu0
    %v1060 = vadd.f32 0.0, %v1059
    %1061 = vmatmul.f32.gmra.mxu0 %v611
    %v1062 = vpop.f32.mrf.mxu0
    %v1063 = vadd.f32 0.0, %v1062
    %1064 = vmatmul.f32.gmra.mxu0 %v614
    %v1065 = vpop.f32.mrf.mxu0
    %v1066 = vadd.f32 0.0, %v1065
    %1067 = vmatmul.f32.gmra.mxu0 %v617
    %v1068 = vpop.f32.mrf.mxu0
    %v1069 = vadd.f32 0.0, %v1068
    %1070 = vmatmul.f32.gmra.mxu0 %v620
    %v1071 = vpop.f32.mrf.mxu0
    %v1072 = vadd.f32 0.0, %v1071
    %1073 = vmatmul.f32.gmra.mxu0 %v623
    %v1074 = vpop.f32.mrf.mxu0
    %v1075 = vadd.f32 0.0, %v1074
    %1076 = vmatmul.f32.gmra.mxu0 %v626
    %v1077 = vpop.f32.mrf.mxu0
    %v1078 = vadd.f32 0.0, %v1077
    %1079 = vmatmul.f32.gmra.mxu0 %v629
    %v1080 = vpop.f32.mrf.mxu0
    %v1081 = vadd.f32 0.0, %v1080
    %1082 = vmatmul.f32.gmra.mxu0 %v632
    %v1083 = vpop.f32.mrf.mxu0
    %v1084 = vadd.f32 0.0, %v1083
    %1085 = vmatmul.f32.gmra.mxu0 %v635
    %v1086 = vpop.f32.mrf.mxu0
    %v1087 = vadd.f32 0.0, %v1086
    %1088 = vmatmul.f32.gmra.mxu0 %v638
    %v1089 = vpop.f32.mrf.mxu0
    %v1090 = vadd.f32 0.0, %v1089
    %1091 = vmatmul.f32.gmra.mxu0 %v641
    %v1092 = vpop.f32.mrf.mxu0
    %v1093 = vadd.f32 0.0, %v1092
    %1094 = vmatmul.f32.gmra.mxu0 %v644
    %v1095 = vpop.f32.mrf.mxu0
    %v1096 = vadd.f32 0.0, %v1095
    %1097 = vmatmul.f32.gmra.mxu0 %v647
    %v1098 = vpop.f32.mrf.mxu0
    %v1099 = vadd.f32 0.0, %v1098
    %1100 = vmatmul.f32.gmra.mxu0 %v650
    %v1101 = vpop.f32.mrf.mxu0
    %v1102 = vadd.f32 0.0, %v1101
    %1103 = vmatmul.f32.gmra.mxu0 %v653
    %v1104 = vpop.f32.mrf.mxu0
    %v1105 = vadd.f32 0.0, %v1104
    %1106 = vmatmul.f32.gmra.mxu0 %v656
    %v1107 = vpop.f32.mrf.mxu0
    %v1108 = vadd.f32 0.0, %v1107
    %1109 = vmatmul.f32.gmra.mxu0 %v659
    %v1110 = vpop.f32.mrf.mxu0
    %v1111 = vadd.f32 0.0, %v1110
    %1112 = vmatmul.f32.gmra.mxu0 %v662
    %v1113 = vpop.f32.mrf.mxu0
    %v1114 = vadd.f32 0.0, %v1113
    %1115 = vmatmul.f32.gmra.mxu0 %v665
    %v1116 = vpop.f32.mrf.mxu0
    %v1117 = vadd.f32 0.0, %v1116
    %1118 = vmatmul.f32.gmra.mxu0 %v668
    %v1119 = vpop.f32.mrf.mxu0
    %v1120 = vadd.f32 0.0, %v1119
    %1121 = vdwg.mxu0
    %1138 = vrot.lane.b32.xlu0 %v688, 1
    %v1139 = vpop.permute.xlu0 %1138
    %1140 = vrot.lane.b32.xlu0 %v801, 1
    %v1141 = vpop.permute.xlu0 %1140
    %1142 = vrot.lane.b32.xlu0 %v914, 1
    %v1143 = vpop.permute.xlu0 %1142
    %1144 = vrot.lane.b32.xlu0 %v1027, 1
    %v1145 = vpop.permute.xlu0 %1144
    %1146 = vrot.lane.b32.xlu0 %v691, 1
    %v1147 = vpop.permute.xlu0 %1146
    %1148 = vrot.lane.b32.xlu0 %v804, 1
    %v1149 = vpop.permute.xlu0 %1148
    %1150 = vrot.lane.b32.xlu0 %v917, 1
    %v1151 = vpop.permute.xlu0 %1150
    %1152 = vrot.lane.b32.xlu0 %v1030, 1
    %v1153 = vpop.permute.xlu0 %1152
    %1154 = vrot.lane.b32.xlu0 %v694, 1
    %v1155 = vpop.permute.xlu0 %1154
    %1156 = vrot.lane.b32.xlu0 %v807, 1
    %v1157 = vpop.permute.xlu0 %1156
    %1158 = vrot.lane.b32.xlu0 %v920, 1
    %v1159 = vpop.permute.xlu0 %1158
    %1160 = vrot.lane.b32.xlu0 %v1033, 1
    %v1161 = vpop.permute.xlu0 %1160
    %1162 = vrot.lane.b32.xlu0 %v697, 1
    %v1163 = vpop.permute.xlu0 %1162
    %1164 = vrot.lane.b32.xlu0 %v810, 1
    %v1165 = vpop.permute.xlu0 %1164
    %1166 = vrot.lane.b32.xlu0 %v923, 1
    %v1167 = vpop.permute.xlu0 %1166
    %1168 = vrot.lane.b32.xlu0 %v1036, 1
    %v1169 = vpop.permute.xlu0 %1168
    %v1170 = vsel %vm60, %v1139, %v1141
    %v1171 = vsel %vm60, %v1141, %v1143
    %v1172 = vsel %vm60, %v1143, %v1145
    %v1173 = vsel %vm60, %v1147, %v1149
    %v1174 = vsel %vm60, %v1149, %v1151
    %v1175 = vsel %vm60, %v1151, %v1153
    %v1176 = vsel %vm60, %v1155, %v1157
    %v1177 = vsel %vm60, %v1157, %v1159
    %v1178 = vsel %vm60, %v1159, %v1161
    %v1179 = vsel %vm60, %v1163, %v1165
    %v1180 = vsel %vm60, %v1165, %v1167
    %v1181 = vsel %vm60, %v1167, %v1169
    %v1198 = vsel %vm60, 0.0, %v1139
    %v1199 = vsel %vm60, 0.0, %v1147
    %v1200 = vsel %vm60, 0.0, %v1155
    %v1201 = vsel %vm60, 0.0, %v1163
    %v1202 = vsel %vm74, %v1198, 0.0
    %v1203 = vsel %vm75, %v1170, 0.0
    %v1204 = vsel %vm76, %v1171, 0.0
    %v1205 = vsel %vm77, %v1172, 0.0
    %v1206 = vsel %vm74, %v1199, 0.0
    %v1207 = vsel %vm75, %v1173, 0.0
    %v1208 = vsel %vm76, %v1174, 0.0
    %v1209 = vsel %vm77, %v1175, 0.0
    %v1210 = vsel %vm74, %v1200, 0.0
    %v1211 = vsel %vm75, %v1176, 0.0
    %v1212 = vsel %vm76, %v1177, 0.0
    %v1213 = vsel %vm77, %v1178, 0.0
    %v1214 = vsel %vm74, %v1201, 0.0
    %v1215 = vsel %vm75, %v1179, 0.0
    %v1216 = vsel %vm76, %v1180, 0.0
    %v1217 = vsel %vm77, %v1181, 0.0
    %v1218 = vadd.f32 %v1202, %v700
    %v1219 = vadd.f32 %v1203, %v813
    %v1220 = vadd.f32 %v1204, %v926
    %v1221 = vadd.f32 %v1205, %v1039
    %v1222 = vadd.f32 %v1206, %v703
    %v1223 = vadd.f32 %v1207, %v816
    %v1224 = vadd.f32 %v1208, %v929
    %v1225 = vadd.f32 %v1209, %v1042
    %v1226 = vadd.f32 %v1210, %v706
    %v1227 = vadd.f32 %v1211, %v819
    %v1228 = vadd.f32 %v1212, %v932
    %v1229 = vadd.f32 %v1213, %v1045
    %v1230 = vadd.f32 %v1214, %v709
    %v1231 = vadd.f32 %v1215, %v822
    %v1232 = vadd.f32 %v1216, %v935
    %v1233 = vadd.f32 %v1217, %v1048
    %1250 = vrot.lane.b32.xlu0 %v712, 127
    %v1251 = vpop.permute.xlu0 %1250
    %1252 = vrot.lane.b32.xlu0 %v825, 127
    %v1253 = vpop.permute.xlu0 %1252
    %1254 = vrot.lane.b32.xlu0 %v938, 127
    %v1255 = vpop.permute.xlu0 %1254
    %1256 = vrot.lane.b32.xlu0 %v1051, 127
    %v1257 = vpop.permute.xlu0 %1256
    %1258 = vrot.lane.b32.xlu0 %v715, 127
    %v1259 = vpop.permute.xlu0 %1258
    %1260 = vrot.lane.b32.xlu0 %v828, 127
    %v1261 = vpop.permute.xlu0 %1260
    %1262 = vrot.lane.b32.xlu0 %v941, 127
    %v1263 = vpop.permute.xlu0 %1262
    %1264 = vrot.lane.b32.xlu0 %v1054, 127
    %v1265 = vpop.permute.xlu0 %1264
    %1266 = vrot.lane.b32.xlu0 %v718, 127
    %v1267 = vpop.permute.xlu0 %1266
    %1268 = vrot.lane.b32.xlu0 %v831, 127
    %v1269 = vpop.permute.xlu0 %1268
    %1270 = vrot.lane.b32.xlu0 %v944, 127
    %v1271 = vpop.permute.xlu0 %1270
    %1272 = vrot.lane.b32.xlu0 %v1057, 127
    %v1273 = vpop.permute.xlu0 %1272
    %1274 = vrot.lane.b32.xlu0 %v721, 127
    %v1275 = vpop.permute.xlu0 %1274
    %1276 = vrot.lane.b32.xlu0 %v834, 127
    %v1277 = vpop.permute.xlu0 %1276
    %1278 = vrot.lane.b32.xlu0 %v947, 127
    %v1279 = vpop.permute.xlu0 %1278
    %1280 = vrot.lane.b32.xlu0 %v1060, 127
    %v1281 = vpop.permute.xlu0 %1280
    %v1282 = vsel %vm94, %v1251, %v1253
    %v1283 = vsel %vm94, %v1253, %v1255
    %v1284 = vsel %vm94, %v1255, %v1257
    %v1285 = vsel %vm94, %v1259, %v1261
    %v1286 = vsel %vm94, %v1261, %v1263
    %v1287 = vsel %vm94, %v1263, %v1265
    %v1288 = vsel %vm94, %v1267, %v1269
    %v1289 = vsel %vm94, %v1269, %v1271
    %v1290 = vsel %vm94, %v1271, %v1273
    %v1291 = vsel %vm94, %v1275, %v1277
    %v1292 = vsel %vm94, %v1277, %v1279
    %v1293 = vsel %vm94, %v1279, %v1281
    %v1310 = vsel %vm94, %v1257, 0.0
    %v1311 = vsel %vm94, %v1265, 0.0
    %v1312 = vsel %vm94, %v1273, 0.0
    %v1313 = vsel %vm94, %v1281, 0.0
    %v1314 = vsel %vm108, %v1282, 0.0
    %v1315 = vsel %vm109, %v1283, 0.0
    %v1316 = vsel %vm110, %v1284, 0.0
    %v1317 = vsel %vm111, %v1310, 0.0
    %v1318 = vsel %vm108, %v1285, 0.0
    %v1319 = vsel %vm109, %v1286, 0.0
    %v1320 = vsel %vm110, %v1287, 0.0
    %v1321 = vsel %vm111, %v1311, 0.0
    %v1322 = vsel %vm108, %v1288, 0.0
    %v1323 = vsel %vm109, %v1289, 0.0
    %v1324 = vsel %vm110, %v1290, 0.0
    %v1325 = vsel %vm111, %v1312, 0.0
    %v1326 = vsel %vm108, %v1291, 0.0
    %v1327 = vsel %vm109, %v1292, 0.0
    %v1328 = vsel %vm110, %v1293, 0.0
    %v1329 = vsel %vm111, %v1313, 0.0
    %v1330 = vadd.f32 %v1218, %v1314
    %v1331 = vadd.f32 %v1219, %v1315
    %v1332 = vadd.f32 %v1220, %v1316
    %v1333 = vadd.f32 %v1221, %v1317
    %v1334 = vadd.f32 %v1222, %v1318
    %v1335 = vadd.f32 %v1223, %v1319
    %v1336 = vadd.f32 %v1224, %v1320
    %v1337 = vadd.f32 %v1225, %v1321
    %v1338 = vadd.f32 %v1226, %v1322
    %v1339 = vadd.f32 %v1227, %v1323
    %v1340 = vadd.f32 %v1228, %v1324
    %v1341 = vadd.f32 %v1229, %v1325
    %v1342 = vadd.f32 %v1230, %v1326
    %v1343 = vadd.f32 %v1231, %v1327
    %v1344 = vadd.f32 %v1232, %v1328
    %v1345 = vadd.f32 %v1233, %v1329
    %v1346 = vld [vmem:[%s5] sm:$0xff]
    %v1347 = vld [vmem:[%s5 + $0x8] sm:$0xff]
    %v1348 = vld [vmem:[%s5 + $0x10] sm:$0xff]
    %v1349 = vld [vmem:[%s5 + $0x18] sm:$0xff]
    %1351 = vset.pattern.permute.xlu0 0
    %1352 = vperm.xlu0 %1351, %v1346
    %v1353 = vpop.permute.xlu0 %1352
    %1356 = vset.pattern.permute.xlu0 0
    %1357 = vperm.xlu0 %1356, %v1347
    %v1358 = vpop.permute.xlu0 %1357
    %1361 = vset.pattern.permute.xlu0 0
    %1362 = vperm.xlu0 %1361, %v1348
    %v1363 = vpop.permute.xlu0 %1362
    %1366 = vset.pattern.permute.xlu0 0
    %1367 = vperm.xlu0 %1366, %v1349
    %v1368 = vpop.permute.xlu0 %1367
    %v1370 = vadd.f32 %v1330, %v1353
    %v1371 = vadd.f32 %v1331, %v1353
    %v1372 = vadd.f32 %v1332, %v1353
    %v1373 = vadd.f32 %v1333, %v1353
    %v1374 = vadd.f32 %v1334, %v1358
    %v1375 = vadd.f32 %v1335, %v1358
    %v1376 = vadd.f32 %v1336, %v1358
    %v1377 = vadd.f32 %v1337, %v1358
    %v1378 = vadd.f32 %v1338, %v1363
    %v1379 = vadd.f32 %v1339, %v1363
    %v1380 = vadd.f32 %v1340, %v1363
    %v1381 = vadd.f32 %v1341, %v1363
    %v1382 = vadd.f32 %v1342, %v1368
    %v1383 = vadd.f32 %v1343, %v1368
    %v1384 = vadd.f32 %v1344, %v1368
    %v1385 = vadd.f32 %v1345, %v1368
    %1402 = vrot.lane.b32.xlu0 %v724, 2
    %v1403 = vpop.permute.xlu0 %1402
    %1404 = vrot.lane.b32.xlu0 %v837, 2
    %v1405 = vpop.permute.xlu0 %1404
    %1406 = vrot.lane.b32.xlu0 %v950, 2
    %v1407 = vpop.permute.xlu0 %1406
    %1408 = vrot.lane.b32.xlu0 %v1063, 2
    %v1409 = vpop.permute.xlu0 %1408
    %1410 = vrot.lane.b32.xlu0 %v727, 2
    %v1411 = vpop.permute.xlu0 %1410
    %1412 = vrot.lane.b32.xlu0 %v840, 2
    %v1413 = vpop.permute.xlu0 %1412
    %1414 = vrot.lane.b32.xlu0 %v953, 2
    %v1415 = vpop.permute.xlu0 %1414
    %1416 = vrot.lane.b32.xlu0 %v1066, 2
    %v1417 = vpop.permute.xlu0 %1416
    %1418 = vrot.lane.b32.xlu0 %v730, 2
    %v1419 = vpop.permute.xlu0 %1418
    %1420 = vrot.lane.b32.xlu0 %v843, 2
    %v1421 = vpop.permute.xlu0 %1420
    %1422 = vrot.lane.b32.xlu0 %v956, 2
    %v1423 = vpop.permute.xlu0 %1422
    %1424 = vrot.lane.b32.xlu0 %v1069, 2
    %v1425 = vpop.permute.xlu0 %1424
    %1426 = vrot.lane.b32.xlu0 %v733, 2
    %v1427 = vpop.permute.xlu0 %1426
    %1428 = vrot.lane.b32.xlu0 %v846, 2
    %v1429 = vpop.permute.xlu0 %1428
    %1430 = vrot.lane.b32.xlu0 %v959, 2
    %v1431 = vpop.permute.xlu0 %1430
    %1432 = vrot.lane.b32.xlu0 %v1072, 2
    %v1433 = vpop.permute.xlu0 %1432
    %vm1434 = vcmask 15360
    %v1435 = vsel %vm1434, %v1403, %v1405
    %v1436 = vsel %vm1434, %v1405, %v1407
    %v1437 = vsel %vm1434, %v1407, %v1409
    %v1438 = vsel %vm1434, %v1411, %v1413
    %v1439 = vsel %vm1434, %v1413, %v1415
    %v1440 = vsel %vm1434, %v1415, %v1417
    %v1441 = vsel %vm1434, %v1419, %v1421
    %v1442 = vsel %vm1434, %v1421, %v1423
    %v1443 = vsel %vm1434, %v1423, %v1425
    %v1444 = vsel %vm1434, %v1427, %v1429
    %v1445 = vsel %vm1434, %v1429, %v1431
    %v1446 = vsel %vm1434, %v1431, %v1433
    %v1463 = vsel %vm1434, 0.0, %v1403
    %v1464 = vsel %vm1434, 0.0, %v1411
    %v1465 = vsel %vm1434, 0.0, %v1419
    %v1466 = vsel %vm1434, 0.0, %v1427
    %v1467 = vsel %vm35, 1, 0
    %v1468 = vperm.slane %v1467, 0
    %v1469 = vperm.slane %v1467, 1
    %v1470 = vperm.slane %v1467, 2
    %v1471 = vperm.slane %v1467, 3
    %vm1472 = vcmp.eq.s32.totalorder %v1468, 1
    %vm1473 = vcmp.eq.s32.totalorder %v1469, 1
    %vm1474 = vcmp.eq.s32.totalorder %v1470, 1
    %vm1475 = vcmp.eq.s32.totalorder %v1471, 1
    %v1476 = vsel %vm1472, %v1463, 0.0
    %v1477 = vsel %vm1473, %v1435, 0.0
    %v1478 = vsel %vm1474, %v1436, 0.0
    %v1479 = vsel %vm1475, %v1437, 0.0
    %v1480 = vsel %vm1472, %v1464, 0.0
    %v1481 = vsel %vm1473, %v1438, 0.0
    %v1482 = vsel %vm1474, %v1439, 0.0
    %v1483 = vsel %vm1475, %v1440, 0.0
    %v1484 = vsel %vm1472, %v1465, 0.0
    %v1485 = vsel %vm1473, %v1441, 0.0
    %v1486 = vsel %vm1474, %v1442, 0.0
    %v1487 = vsel %vm1475, %v1443, 0.0
    %v1488 = vsel %vm1472, %v1466, 0.0
    %v1489 = vsel %vm1473, %v1444, 0.0
    %v1490 = vsel %vm1474, %v1445, 0.0
    %v1491 = vsel %vm1475, %v1446, 0.0
    %1508 = vrot.lane.b32.xlu0 %v736, 1
    %v1509 = vpop.permute.xlu0 %1508
    %1510 = vrot.lane.b32.xlu0 %v849, 1
    %v1511 = vpop.permute.xlu0 %1510
    %1512 = vrot.lane.b32.xlu0 %v962, 1
    %v1513 = vpop.permute.xlu0 %1512
    %1514 = vrot.lane.b32.xlu0 %v1075, 1
    %v1515 = vpop.permute.xlu0 %1514
    %1516 = vrot.lane.b32.xlu0 %v739, 1
    %v1517 = vpop.permute.xlu0 %1516
    %1518 = vrot.lane.b32.xlu0 %v852, 1
    %v1519 = vpop.permute.xlu0 %1518
    %1520 = vrot.lane.b32.xlu0 %v965, 1
    %v1521 = vpop.permute.xlu0 %1520
    %1522 = vrot.lane.b32.xlu0 %v1078, 1
    %v1523 = vpop.permute.xlu0 %1522
    %1524 = vrot.lane.b32.xlu0 %v742, 1
    %v1525 = vpop.permute.xlu0 %1524
    %1526 = vrot.lane.b32.xlu0 %v855, 1
    %v1527 = vpop.permute.xlu0 %1526
    %1528 = vrot.lane.b32.xlu0 %v968, 1
    %v1529 = vpop.permute.xlu0 %1528
    %1530 = vrot.lane.b32.xlu0 %v1081, 1
    %v1531 = vpop.permute.xlu0 %1530
    %1532 = vrot.lane.b32.xlu0 %v745, 1
    %v1533 = vpop.permute.xlu0 %1532
    %1534 = vrot.lane.b32.xlu0 %v858, 1
    %v1535 = vpop.permute.xlu0 %1534
    %1536 = vrot.lane.b32.xlu0 %v971, 1
    %v1537 = vpop.permute.xlu0 %1536
    %1538 = vrot.lane.b32.xlu0 %v1084, 1
    %v1539 = vpop.permute.xlu0 %1538
    %v1540 = vsel %vm60, %v1509, %v1511
    %v1541 = vsel %vm60, %v1511, %v1513
    %v1542 = vsel %vm60, %v1513, %v1515
    %v1543 = vsel %vm60, %v1517, %v1519
    %v1544 = vsel %vm60, %v1519, %v1521
    %v1545 = vsel %vm60, %v1521, %v1523
    %v1546 = vsel %vm60, %v1525, %v1527
    %v1547 = vsel %vm60, %v1527, %v1529
    %v1548 = vsel %vm60, %v1529, %v1531
    %v1549 = vsel %vm60, %v1533, %v1535
    %v1550 = vsel %vm60, %v1535, %v1537
    %v1551 = vsel %vm60, %v1537, %v1539
    %v1568 = vsel %vm60, 0.0, %v1509
    %v1569 = vsel %vm60, 0.0, %v1517
    %v1570 = vsel %vm60, 0.0, %v1525
    %v1571 = vsel %vm60, 0.0, %v1533
    %v1572 = vsel %vm74, %v1568, 0.0
    %v1573 = vsel %vm75, %v1540, 0.0
    %v1574 = vsel %vm76, %v1541, 0.0
    %v1575 = vsel %vm77, %v1542, 0.0
    %v1576 = vsel %vm74, %v1569, 0.0
    %v1577 = vsel %vm75, %v1543, 0.0
    %v1578 = vsel %vm76, %v1544, 0.0
    %v1579 = vsel %vm77, %v1545, 0.0
    %v1580 = vsel %vm74, %v1570, 0.0
    %v1581 = vsel %vm75, %v1546, 0.0
    %v1582 = vsel %vm76, %v1547, 0.0
    %v1583 = vsel %vm77, %v1548, 0.0
    %v1584 = vsel %vm74, %v1571, 0.0
    %v1585 = vsel %vm75, %v1549, 0.0
    %v1586 = vsel %vm76, %v1550, 0.0
    %v1587 = vsel %vm77, %v1551, 0.0
    %v1588 = vadd.f32 %v1476, %v1572
    %v1589 = vadd.f32 %v1477, %v1573
    %v1590 = vadd.f32 %v1478, %v1574
    %v1591 = vadd.f32 %v1479, %v1575
    %v1592 = vadd.f32 %v1480, %v1576
    %v1593 = vadd.f32 %v1481, %v1577
    %v1594 = vadd.f32 %v1482, %v1578
    %v1595 = vadd.f32 %v1483, %v1579
    %v1596 = vadd.f32 %v1484, %v1580
    %v1597 = vadd.f32 %v1485, %v1581
    %v1598 = vadd.f32 %v1486, %v1582
    %v1599 = vadd.f32 %v1487, %v1583
    %v1600 = vadd.f32 %v1488, %v1584
    %v1601 = vadd.f32 %v1489, %v1585
    %v1602 = vadd.f32 %v1490, %v1586
    %v1603 = vadd.f32 %v1491, %v1587
    %v1604 = vadd.f32 %v1588, %v748
    %v1605 = vadd.f32 %v1589, %v861
    %v1606 = vadd.f32 %v1590, %v974
    %v1607 = vadd.f32 %v1591, %v1087
    %v1608 = vadd.f32 %v1592, %v751
    %v1609 = vadd.f32 %v1593, %v864
    %v1610 = vadd.f32 %v1594, %v977
    %v1611 = vadd.f32 %v1595, %v1090
    %v1612 = vadd.f32 %v1596, %v754
    %v1613 = vadd.f32 %v1597, %v867
    %v1614 = vadd.f32 %v1598, %v980
    %v1615 = vadd.f32 %v1599, %v1093
    %v1616 = vadd.f32 %v1600, %v757
    %v1617 = vadd.f32 %v1601, %v870
    %v1618 = vadd.f32 %v1602, %v983
    %v1619 = vadd.f32 %v1603, %v1096
    %1636 = vrot.lane.b32.xlu0 %v760, 127
    %v1637 = vpop.permute.xlu0 %1636
    %1638 = vrot.lane.b32.xlu0 %v873, 127
    %v1639 = vpop.permute.xlu0 %1638
    %1640 = vrot.lane.b32.xlu0 %v986, 127
    %v1641 = vpop.permute.xlu0 %1640
    %1642 = vrot.lane.b32.xlu0 %v1099, 127
    %v1643 = vpop.permute.xlu0 %1642
    %1644 = vrot.lane.b32.xlu0 %v763, 127
    %v1645 = vpop.permute.xlu0 %1644
    %1646 = vrot.lane.b32.xlu0 %v876, 127
    %v1647 = vpop.permute.xlu0 %1646
    %1648 = vrot.lane.b32.xlu0 %v989, 127
    %v1649 = vpop.permute.xlu0 %1648
    %1650 = vrot.lane.b32.xlu0 %v1102, 127
    %v1651 = vpop.permute.xlu0 %1650
    %1652 = vrot.lane.b32.xlu0 %v766, 127
    %v1653 = vpop.permute.xlu0 %1652
    %1654 = vrot.lane.b32.xlu0 %v879, 127
    %v1655 = vpop.permute.xlu0 %1654
    %1656 = vrot.lane.b32.xlu0 %v992, 127
    %v1657 = vpop.permute.xlu0 %1656
    %1658 = vrot.lane.b32.xlu0 %v1105, 127
    %v1659 = vpop.permute.xlu0 %1658
    %1660 = vrot.lane.b32.xlu0 %v769, 127
    %v1661 = vpop.permute.xlu0 %1660
    %1662 = vrot.lane.b32.xlu0 %v882, 127
    %v1663 = vpop.permute.xlu0 %1662
    %1664 = vrot.lane.b32.xlu0 %v995, 127
    %v1665 = vpop.permute.xlu0 %1664
    %1666 = vrot.lane.b32.xlu0 %v1108, 127
    %v1667 = vpop.permute.xlu0 %1666
    %v1668 = vsel %vm94, %v1637, %v1639
    %v1669 = vsel %vm94, %v1639, %v1641
    %v1670 = vsel %vm94, %v1641, %v1643
    %v1671 = vsel %vm94, %v1645, %v1647
    %v1672 = vsel %vm94, %v1647, %v1649
    %v1673 = vsel %vm94, %v1649, %v1651
    %v1674 = vsel %vm94, %v1653, %v1655
    %v1675 = vsel %vm94, %v1655, %v1657
    %v1676 = vsel %vm94, %v1657, %v1659
    %v1677 = vsel %vm94, %v1661, %v1663
    %v1678 = vsel %vm94, %v1663, %v1665
    %v1679 = vsel %vm94, %v1665, %v1667
    %v1696 = vsel %vm94, %v1643, 0.0
    %v1697 = vsel %vm94, %v1651, 0.0
    %v1698 = vsel %vm94, %v1659, 0.0
    %v1699 = vsel %vm94, %v1667, 0.0
    %v1700 = vsel %vm108, %v1668, 0.0
    %v1701 = vsel %vm109, %v1669, 0.0
    %v1702 = vsel %vm110, %v1670, 0.0
    %v1703 = vsel %vm111, %v1696, 0.0
    %v1704 = vsel %vm108, %v1671, 0.0
    %v1705 = vsel %vm109, %v1672, 0.0
    %v1706 = vsel %vm110, %v1673, 0.0
    %v1707 = vsel %vm111, %v1697, 0.0
    %v1708 = vsel %vm108, %v1674, 0.0
    %v1709 = vsel %vm109, %v1675, 0.0
    %v1710 = vsel %vm110, %v1676, 0.0
    %v1711 = vsel %vm111, %v1698, 0.0
    %v1712 = vsel %vm108, %v1677, 0.0
    %v1713 = vsel %vm109, %v1678, 0.0
    %v1714 = vsel %vm110, %v1679, 0.0
    %v1715 = vsel %vm111, %v1699, 0.0
    %v1716 = vadd.f32 %v1604, %v1700
    %v1717 = vadd.f32 %v1605, %v1701
    %v1718 = vadd.f32 %v1606, %v1702
    %v1719 = vadd.f32 %v1607, %v1703
    %v1720 = vadd.f32 %v1608, %v1704
    %v1721 = vadd.f32 %v1609, %v1705
    %v1722 = vadd.f32 %v1610, %v1706
    %v1723 = vadd.f32 %v1611, %v1707
    %v1724 = vadd.f32 %v1612, %v1708
    %v1725 = vadd.f32 %v1613, %v1709
    %v1726 = vadd.f32 %v1614, %v1710
    %v1727 = vadd.f32 %v1615, %v1711
    %v1728 = vadd.f32 %v1616, %v1712
    %v1729 = vadd.f32 %v1617, %v1713
    %v1730 = vadd.f32 %v1618, %v1714
    %v1731 = vadd.f32 %v1619, %v1715
    %1748 = vrot.lane.b32.xlu0 %v772, 126
    %v1749 = vpop.permute.xlu0 %1748
    %1750 = vrot.lane.b32.xlu0 %v885, 126
    %v1751 = vpop.permute.xlu0 %1750
    %1752 = vrot.lane.b32.xlu0 %v998, 126
    %v1753 = vpop.permute.xlu0 %1752
    %1754 = vrot.lane.b32.xlu0 %v1111, 126
    %v1755 = vpop.permute.xlu0 %1754
    %1756 = vrot.lane.b32.xlu0 %v775, 126
    %v1757 = vpop.permute.xlu0 %1756
    %1758 = vrot.lane.b32.xlu0 %v888, 126
    %v1759 = vpop.permute.xlu0 %1758
    %1760 = vrot.lane.b32.xlu0 %v1001, 126
    %v1761 = vpop.permute.xlu0 %1760
    %1762 = vrot.lane.b32.xlu0 %v1114, 126
    %v1763 = vpop.permute.xlu0 %1762
    %1764 = vrot.lane.b32.xlu0 %v778, 126
    %v1765 = vpop.permute.xlu0 %1764
    %1766 = vrot.lane.b32.xlu0 %v891, 126
    %v1767 = vpop.permute.xlu0 %1766
    %1768 = vrot.lane.b32.xlu0 %v1004, 126
    %v1769 = vpop.permute.xlu0 %1768
    %1770 = vrot.lane.b32.xlu0 %v1117, 126
    %v1771 = vpop.permute.xlu0 %1770
    %1772 = vrot.lane.b32.xlu0 %v781, 126
    %v1773 = vpop.permute.xlu0 %1772
    %1774 = vrot.lane.b32.xlu0 %v894, 126
    %v1775 = vpop.permute.xlu0 %1774
    %1776 = vrot.lane.b32.xlu0 %v1007, 126
    %v1777 = vpop.permute.xlu0 %1776
    %1778 = vrot.lane.b32.xlu0 %v1120, 126
    %v1779 = vpop.permute.xlu0 %1778
    %vm1780 = vcmask 1031168
    %v1781 = vsel %vm1780, %v1749, %v1751
    %v1782 = vsel %vm1780, %v1751, %v1753
    %v1783 = vsel %vm1780, %v1753, %v1755
    %v1784 = vsel %vm1780, %v1757, %v1759
    %v1785 = vsel %vm1780, %v1759, %v1761
    %v1786 = vsel %vm1780, %v1761, %v1763
    %v1787 = vsel %vm1780, %v1765, %v1767
    %v1788 = vsel %vm1780, %v1767, %v1769
    %v1789 = vsel %vm1780, %v1769, %v1771
    %v1790 = vsel %vm1780, %v1773, %v1775
    %v1791 = vsel %vm1780, %v1775, %v1777
    %v1792 = vsel %vm1780, %v1777, %v1779
    %v1809 = vsel %vm1780, %v1755, 0.0
    %v1810 = vsel %vm1780, %v1763, 0.0
    %v1811 = vsel %vm1780, %v1771, 0.0
    %v1812 = vsel %vm1780, %v1779, 0.0
    %v1813 = vsel %vm47, 1, 0
    %v1814 = vperm.slane %v1813, 0
    %v1815 = vperm.slane %v1813, 1
    %v1816 = vperm.slane %v1813, 2
    %v1817 = vperm.slane %v1813, 3
    %vm1818 = vcmp.eq.s32.totalorder %v1814, 1
    %vm1819 = vcmp.eq.s32.totalorder %v1815, 1
    %vm1820 = vcmp.eq.s32.totalorder %v1816, 1
    %vm1821 = vcmp.eq.s32.totalorder %v1817, 1
    %v1822 = vsel %vm1818, %v1781, 0.0
    %v1823 = vsel %vm1819, %v1782, 0.0
    %v1824 = vsel %vm1820, %v1783, 0.0
    %v1825 = vsel %vm1821, %v1809, 0.0
    %v1826 = vsel %vm1818, %v1784, 0.0
    %v1827 = vsel %vm1819, %v1785, 0.0
    %v1828 = vsel %vm1820, %v1786, 0.0
    %v1829 = vsel %vm1821, %v1810, 0.0
    %v1830 = vsel %vm1818, %v1787, 0.0
    %v1831 = vsel %vm1819, %v1788, 0.0
    %v1832 = vsel %vm1820, %v1789, 0.0
    %v1833 = vsel %vm1821, %v1811, 0.0
    %v1834 = vsel %vm1818, %v1790, 0.0
    %v1835 = vsel %vm1819, %v1791, 0.0
    %v1836 = vsel %vm1820, %v1792, 0.0
    %v1837 = vsel %vm1821, %v1812, 0.0
    %v1838 = vadd.f32 %v1716, %v1822
    %v1839 = vadd.f32 %v1717, %v1823
    %v1840 = vadd.f32 %v1718, %v1824
    %v1841 = vadd.f32 %v1719, %v1825
    %v1842 = vadd.f32 %v1720, %v1826
    %v1843 = vadd.f32 %v1721, %v1827
    %v1844 = vadd.f32 %v1722, %v1828
    %v1845 = vadd.f32 %v1723, %v1829
    %v1846 = vadd.f32 %v1724, %v1830
    %v1847 = vadd.f32 %v1725, %v1831
    %v1848 = vadd.f32 %v1726, %v1832
    %v1849 = vadd.f32 %v1727, %v1833
    %v1850 = vadd.f32 %v1728, %v1834
    %v1851 = vadd.f32 %v1729, %v1835
    %v1852 = vadd.f32 %v1730, %v1836
    %v1853 = vadd.f32 %v1731, %v1837
    %v1854 = vld [vmem:[%s6] sm:$0xff]
    %v1855 = vld [vmem:[%s6 + $0x8] sm:$0xff]
    %v1856 = vld [vmem:[%s6 + $0x10] sm:$0xff]
    %v1857 = vld [vmem:[%s6 + $0x18] sm:$0xff]
    %1859 = vset.pattern.permute.xlu0 0
    %1860 = vperm.xlu0 %1859, %v1854
    %v1861 = vpop.permute.xlu0 %1860
    %1864 = vset.pattern.permute.xlu0 0
    %1865 = vperm.xlu0 %1864, %v1855
    %v1866 = vpop.permute.xlu0 %1865
    %1869 = vset.pattern.permute.xlu0 0
    %1870 = vperm.xlu0 %1869, %v1856
    %v1871 = vpop.permute.xlu0 %1870
    %1874 = vset.pattern.permute.xlu0 0
    %1875 = vperm.xlu0 %1874, %v1857
    %v1876 = vpop.permute.xlu0 %1875
    %v1878 = vadd.f32 %v1838, %v1861
    %v1879 = vadd.f32 %v1839, %v1861
    %v1880 = vadd.f32 %v1840, %v1861
    %v1881 = vadd.f32 %v1841, %v1861
    %v1882 = vadd.f32 %v1842, %v1866
    %v1883 = vadd.f32 %v1843, %v1866
    %v1884 = vadd.f32 %v1844, %v1866
    %v1885 = vadd.f32 %v1845, %v1866
    %v1886 = vadd.f32 %v1846, %v1871
    %v1887 = vadd.f32 %v1847, %v1871
    %v1888 = vadd.f32 %v1848, %v1871
    %v1889 = vadd.f32 %v1849, %v1871
    %v1890 = vadd.f32 %v1850, %v1876
    %v1891 = vadd.f32 %v1851, %v1876
    %v1892 = vadd.f32 %v1852, %v1876
    %v1893 = vadd.f32 %v1853, %v1876
    %v1894 = vmax.f32 %v299, 0.0
    %v1895 = vmax.f32 %v364, 0.0
    %v1896 = vmax.f32 %v429, 0.0
    %v1897 = vmax.f32 %v494, 0.0
    %v1898 = vmax.f32 %v302, 0.0
    %v1899 = vmax.f32 %v367, 0.0
    %v1900 = vmax.f32 %v432, 0.0
    %v1901 = vmax.f32 %v497, 0.0
    %v1902 = vmax.f32 %v305, 0.0
    %v1903 = vmax.f32 %v370, 0.0
    %v1904 = vmax.f32 %v435, 0.0
    %v1905 = vmax.f32 %v500, 0.0
    %v1906 = vmax.f32 %v308, 0.0
    %v1907 = vmax.f32 %v373, 0.0
    %v1908 = vmax.f32 %v438, 0.0
    %v1909 = vmax.f32 %v503, 0.0
    %1910 = vst [vmem:[#allocation2] sm:$0xff] %v1894
    %1911 = vst [vmem:[#allocation2 + $0x8] sm:$0xff] %v1895
    %1912 = vst [vmem:[#allocation2 + $0x10] sm:$0xff] %v1896
    %1913 = vst [vmem:[#allocation2 + $0x18] sm:$0xff] %v1897
    %1914 = vst [vmem:[#allocation2 + $0x20] sm:$0xff] %v1898
    %1915 = vst [vmem:[#allocation2 + $0x28] sm:$0xff] %v1899
    %1916 = vst [vmem:[#allocation2 + $0x30] sm:$0xff] %v1900
    %1917 = vst [vmem:[#allocation2 + $0x38] sm:$0xff] %v1901
    %1918 = vst [vmem:[#allocation2 + $0x40] sm:$0xff] %v1902
    %1919 = vst [vmem:[#allocation2 + $0x48] sm:$0xff] %v1903
    %1920 = vst [vmem:[#allocation2 + $0x50] sm:$0xff] %v1904
    %1921 = vst [vmem:[#allocation2 + $0x58] sm:$0xff] %v1905
    %1922 = vst [vmem:[#allocation2 + $0x60] sm:$0xff] %v1906
    %1923 = vst [vmem:[#allocation2 + $0x68] sm:$0xff] %v1907
    %1924 = vst [vmem:[#allocation2 + $0x70] sm:$0xff] %v1908
    %1925 = vst [vmem:[#allocation2 + $0x78] sm:$0xff] %v1909
    %v1926 = vmax.f32 %v1370, 0.0
    %v1927 = vmax.f32 %v1371, 0.0
    %v1928 = vmax.f32 %v1372, 0.0
    %v1929 = vmax.f32 %v1373, 0.0
    %v1930 = vmax.f32 %v1374, 0.0
    %v1931 = vmax.f32 %v1375, 0.0
    %v1932 = vmax.f32 %v1376, 0.0
    %v1933 = vmax.f32 %v1377, 0.0
    %v1934 = vmax.f32 %v1378, 0.0
    %v1935 = vmax.f32 %v1379, 0.0
    %v1936 = vmax.f32 %v1380, 0.0
    %v1937 = vmax.f32 %v1381, 0.0
    %v1938 = vmax.f32 %v1382, 0.0
    %v1939 = vmax.f32 %v1383, 0.0
    %v1940 = vmax.f32 %v1384, 0.0
    %v1941 = vmax.f32 %v1385, 0.0
    %1942 = vst [vmem:[#allocation2 + $0x80] sm:$0xff] %v1926
    %1943 = vst [vmem:[#allocation2 + $0x88] sm:$0xff] %v1927
    %1944 = vst [vmem:[#allocation2 + $0x90] sm:$0xff] %v1928
    %1945 = vst [vmem:[#allocation2 + $0x98] sm:$0xff] %v1929
    %1946 = vst [vmem:[#allocation2 + $0xa0] sm:$0xff] %v1930
    %1947 = vst [vmem:[#allocation2 + $0xa8] sm:$0xff] %v1931
    %1948 = vst [vmem:[#allocation2 + $0xb0] sm:$0xff] %v1932
    %1949 = vst [vmem:[#allocation2 + $0xb8] sm:$0xff] %v1933
    %1950 = vst [vmem:[#allocation2 + $0xc0] sm:$0xff] %v1934
    %1951 = vst [vmem:[#allocation2 + $0xc8] sm:$0xff] %v1935
    %1952 = vst [vmem:[#allocation2 + $0xd0] sm:$0xff] %v1936
    %1953 = vst [vmem:[#allocation2 + $0xd8] sm:$0xff] %v1937
    %1954 = vst [vmem:[#allocation2 + $0xe0] sm:$0xff] %v1938
    %1955 = vst [vmem:[#allocation2 + $0xe8] sm:$0xff] %v1939
    %1956 = vst [vmem:[#allocation2 + $0xf0] sm:$0xff] %v1940
    %1957 = vst [vmem:[#allocation2 + $0xf8] sm:$0xff] %v1941
    %v1958 = vmax.f32 %v1878, 0.0
    %v1959 = vmax.f32 %v1879, 0.0
    %v1960 = vmax.f32 %v1880, 0.0
    %v1961 = vmax.f32 %v1881, 0.0
    %v1962 = vmax.f32 %v1882, 0.0
    %v1963 = vmax.f32 %v1883, 0.0
    %v1964 = vmax.f32 %v1884, 0.0
    %v1965 = vmax.f32 %v1885, 0.0
    %v1966 = vmax.f32 %v1886, 0.0
    %v1967 = vmax.f32 %v1887, 0.0
    %v1968 = vmax.f32 %v1888, 0.0
    %v1969 = vmax.f32 %v1889, 0.0
    %v1970 = vmax.f32 %v1890, 0.0
    %v1971 = vmax.f32 %v1891, 0.0
    %v1972 = vmax.f32 %v1892, 0.0
    %v1973 = vmax.f32 %v1893, 0.0
    %1974 = vst [vmem:[#allocation2 + $0x100] sm:$0xff] %v1958
    %1975 = vst [vmem:[#allocation2 + $0x108] sm:$0xff] %v1959
    %1976 = vst [vmem:[#allocation2 + $0x110] sm:$0xff] %v1960
    %1977 = vst [vmem:[#allocation2 + $0x118] sm:$0xff] %v1961
    %1978 = vst [vmem:[#allocation2 + $0x120] sm:$0xff] %v1962
    %1979 = vst [vmem:[#allocation2 + $0x128] sm:$0xff] %v1963
    %1980 = vst [vmem:[#allocation2 + $0x130] sm:$0xff] %v1964
    %1981 = vst [vmem:[#allocation2 + $0x138] sm:$0xff] %v1965
    %1982 = vst [vmem:[#allocation2 + $0x140] sm:$0xff] %v1966
    %1983 = vst [vmem:[#allocation2 + $0x148] sm:$0xff] %v1967
    %1984 = vst [vmem:[#allocation2 + $0x150] sm:$0xff] %v1968
    %1985 = vst [vmem:[#allocation2 + $0x158] sm:$0xff] %v1969
    %1986 = vst [vmem:[#allocation2 + $0x160] sm:$0xff] %v1970
    %1987 = vst [vmem:[#allocation2 + $0x168] sm:$0xff] %v1971
    %1988 = vst [vmem:[#allocation2 + $0x170] sm:$0xff] %v1972
    %1989 = vst [vmem:[#allocation2 + $0x178] sm:$0xff] %v1973
    %v1990 = vmax.f32 %v335, 0.0
    %v1991 = vmax.f32 %v400, 0.0
    %v1992 = vmax.f32 %v465, 0.0
    %v1993 = vmax.f32 %v530, 0.0
    %v1994 = vmax.f32 %v338, 0.0
    %v1995 = vmax.f32 %v403, 0.0
    %v1996 = vmax.f32 %v468, 0.0
    %v1997 = vmax.f32 %v533, 0.0
    %v1998 = vmax.f32 %v341, 0.0
    %v1999 = vmax.f32 %v406, 0.0
    %v2000 = vmax.f32 %v471, 0.0
    %v2001 = vmax.f32 %v536, 0.0
    %v2002 = vmax.f32 %v344, 0.0
    %v2003 = vmax.f32 %v409, 0.0
    %v2004 = vmax.f32 %v474, 0.0
    %v2005 = vmax.f32 %v539, 0.0
    %2006 = vst [vmem:[#allocation2 + $0x180] sm:$0xff] %v1990
    %2007 = vst [vmem:[#allocation2 + $0x188] sm:$0xff] %v1991
    %2008 = vst [vmem:[#allocation2 + $0x190] sm:$0xff] %v1992
    %2009 = vst [vmem:[#allocation2 + $0x198] sm:$0xff] %v1993
    %2010 = vst [vmem:[#allocation2 + $0x1a0] sm:$0xff] %v1994
    %2011 = vst [vmem:[#allocation2 + $0x1a8] sm:$0xff] %v1995
    %2012 = vst [vmem:[#allocation2 + $0x1b0] sm:$0xff] %v1996
    %2013 = vst [vmem:[#allocation2 + $0x1b8] sm:$0xff] %v1997
    %2014 = vst [vmem:[#allocation2 + $0x1c0] sm:$0xff] %v1998
    %2015 = vst [vmem:[#allocation2 + $0x1c8] sm:$0xff] %v1999
    %2016 = vst [vmem:[#allocation2 + $0x1d0] sm:$0xff] %v2000
    %2017 = vst [vmem:[#allocation2 + $0x1d8] sm:$0xff] %v2001
    %2018 = vst [vmem:[#allocation2 + $0x1e0] sm:$0xff] %v2002
    %2019 = vst [vmem:[#allocation2 + $0x1e8] sm:$0xff] %v2003
    %2020 = vst [vmem:[#allocation2 + $0x1f0] sm:$0xff] %v2004
    %2021 = vst [vmem:[#allocation2 + $0x1f8] sm:$0xff] %v2005
    // Predicated region
    $region30: #{tpu_custom_call.1} parent=1 // pred_check
      _
    $region31: #{tpu_custom_call.1} parent=1 // pred_check_branch
      %2023 = sbr.rel (0) target = $region33
    $region32: #{tpu_custom_call.1} parent=1 // pred_region
      %2025 = vsyncadd [#allocation3], 0
      %s2026 = sshll.u32 [#allocation2], 4
      %s2027 = int_to_ptr.vmem [resolvable:$true] %s2026
      %s2028 = sshll.u32 %s7, 4
      %s2029 = int_to_ptr.hbm [resolvable:$true] %s2028
      %2034 = dma.vmem_to_hbm [thread:$0]  %s2027, 8192, %s2029, [#allocation3], 512, 512, 32
    $region33: #{tpu_custom_call.1} parent=1 // pred_fallthru
      _
    // Predicated region
    $region34: #{tpu_custom_call.1} parent=1 // pred_check
      _
    $region35: #{tpu_custom_call.1} parent=1 // pred_check_branch
      %2036 = sbr.rel (0) target = $region37
    $region36: #{tpu_custom_call.1} parent=1 // pred_region
      %2038 = dma.done [#allocation3], 8192
    $region37: #{tpu_custom_call.1} parent=1 // pred_fallthru
      _
    %2039 = vsyncpa [#allocation3], 1

</llo_original>
